<compile_context>
chip_gen: v5e
topology: v5e:2x2
jax: 0.10.0
libtpu: 0.0.40
codegen_flags: <defaults>
</compile_context>

<pallas_src>
import numpy as np
import jax
import jax.numpy as jnp
from jax import lax
from jax.experimental import pallas as pl
from jax.experimental.pallas import tpu as pltpu

KSIZE = 7
PAD = 3  # padding for kernel_size=7 (matches the PyTorch module)


def cbam_kernel(wsa_ref,    # SMEM (2*7*7,) f32  : spatial conv weights, flat [c_in, ky, kx]
                x_ref,      # VMEM (C, H, W)     : one batch element, NCHW-native (W on lanes)
                wca_ref,    # VMEM (C_out, C_in) : 1x1-conv weight
                bca_ref,    # VMEM (C, 1)        : 1x1-conv bias
                o_ref,      # VMEM (C, H, W)     : output tile
                pad_ref):   # VMEM scratch (2, H+2*PAD, W+2*PAD): padded [mean, max] maps
    x = x_ref[...].astype(jnp.float32)                         # (C, H, W)
    C, H, W = x.shape
    inv_hw = 1.0 / float(H * W)

    # ---------------- channel attention (AdaptiveAvgPool2d(1) + 1x1 conv + sigmoid) ----------------
    s = jnp.sum(x, axis=2)                                     # (C, H)  lane (W) reduce
    pool = jnp.sum(s, axis=1, keepdims=True) * inv_hw          # (C, 1)
    y = jnp.dot(wca_ref[...], pool,
                preferred_element_type=jnp.float32) + bca_ref[...]   # (C, 1)
    ca = jax.nn.sigmoid(y)                                     # (C, 1)
    x1 = x * ca[:, :, None]                                    # per-channel scale, (C, H, W)

    # ---------------- spatial attention (cat[mean_c, max_c] -> 7x7 conv -> sigmoid) ----------------
    m_mean = jnp.mean(x1, axis=0)                              # (H, W) channel mean
    m_max = jnp.max(x1, axis=0)                                # (H, W) channel max

    # Zero the (tiny, lane-dense) padded scratch, then write the interior.
    # Re-zeroing every step keeps the kernel state-free across grid iterations,
    # which is required for correctness when the batch axis is core-sharded.
    pad_ref[...] = jnp.zeros(pad_ref.shape, pad_ref.dtype)
    pad_ref[0, PAD:PAD + H, PAD:PAD + W] = m_mean
    pad_ref[1, PAD:PAD + H, PAD:PAD + W] = m_max

    # 7x7 conv (cross-correlation, same as torch.nn.Conv2d), fully unrolled.
    # Load each padded row strip once; shift along kx with in-register slices.
    acc = jnp.zeros((H, W), jnp.float32)
    for c in range(2):
        for ky in range(KSIZE):
            strip = pad_ref[c, ky:ky + H, :]                   # (H, W + 2*PAD)
            for kx in range(KSIZE):
                w = wsa_ref[c * KSIZE * KSIZE + ky * KSIZE + kx]   # scalar from SMEM
                acc = acc + w * strip[:, kx:kx + W]
    sa = jax.nn.sigmoid(acc)                                   # (H, W)

    o_ref[...] = (x1 * sa[None, :, :]).astype(o_ref.dtype)


def cbam_pallas(x, wca, bca, wsa):
    """x: (B,C,H,W); wca: (C,C,1,1); bca: (C,); wsa: (1,2,7,7). Returns (B,C,H,W)."""
    B, C, H, W = x.shape
    wca_2d = wca.reshape(C, C).astype(jnp.float32)             # (C_out, C_in)
    bca_2d = bca.reshape(C, 1).astype(jnp.float32)             # (C, 1)
    wsa_flat = wsa.reshape(-1).astype(jnp.float32)             # (2*7*7,)

    grid_spec = pltpu.PrefetchScalarGridSpec(
        num_scalar_prefetch=1,          # wsa_flat lands in SMEM
        grid=(B,),
        in_specs=[
            pl.BlockSpec((None, C, H, W), lambda b, wsa: (b, 0, 0, 0)),
            pl.BlockSpec((C, C), lambda b, wsa: (0, 0)),
            pl.BlockSpec((C, 1), lambda b, wsa: (0, 0)),
        ],
        out_specs=pl.BlockSpec((None, C, H, W), lambda b, wsa: (b, 0, 0, 0)),
        scratch_shapes=[pltpu.VMEM((2, H + 2 * PAD, W + 2 * PAD), jnp.float32)],
    )

    return pl.pallas_call(
        cbam_kernel,
        out_shape=jax.ShapeDtypeStruct((B, C, H, W), x.dtype),
        grid_spec=grid_spec,
        compiler_params=pltpu.CompilerParams(
            dimension_semantics=("parallel",),   # batch elems independent -> v7x 2-TC sharding
            vmem_limit_bytes=32 * 1024 * 1024,
        ),
    )(wsa_flat, x, wca_2d, bca_2d)


def cbam_ref(x, wca, bca, wsa):
    """Pure-JAX reference matching the PyTorch module (NCHW)."""
    B, C, H, W = x.shape
    pool = jnp.mean(x, axis=(2, 3), keepdims=True)                       # (B,C,1,1)
    y = jnp.einsum('oi,bihw->bohw', wca.reshape(C, C), pool) + bca.reshape(1, C, 1, 1)
    x1 = x * jax.nn.sigmoid(y)
    sm = jnp.concatenate([jnp.mean(x1, axis=1, keepdims=True),
                          jnp.max(x1, axis=1, keepdims=True)], axis=1)   # (B,2,H,W)
    conv = lax.conv_general_dilated(sm, wsa, window_strides=(1, 1),
                                    padding=((PAD, PAD), (PAD, PAD)),
                                    dimension_numbers=('NCHW', 'OIHW', 'NCHW'))
    return x1 * jax.nn.sigmoid(conv)


if __name__ == "__main__":
    key = jax.random.PRNGKey(0)
    k1, k2, k3, k4 = jax.random.split(key, 4)

    B, C, H, W = 2, 4, 16, 16
    x = jax.random.normal(k1, (B, C, H, W), jnp.float32)
    # deterministic synthetic parameters (shapes from the module __init__)
    wca = jax.random.normal(k2, (C, C, 1, 1), jnp.float32) * 0.3          # ChannelAttention.fc weight
    bca = jax.random.normal(k3, (C,), jnp.float32) * 0.1                  # ChannelAttention.fc bias
    wsa = jax.random.normal(k4, (1, 2, KSIZE, KSIZE), jnp.float32) * 0.2  # SpatialAttention.cv1 weight

    out = cbam_pallas(x, wca, bca, wsa)
    out = jax.block_until_ready(out)

    ref = cbam_ref(x, wca, bca, wsa)
    np.testing.assert_allclose(np.asarray(out), np.asarray(ref), rtol=1e-4, atol=1e-4)

    print("KERNEL_OK")
</pallas_src>

<mosaic_0001>
module attributes {stable_mosaic.version = 11 : i64} {
  func.func @cbam_kernel(%arg0: i32, %arg1: memref<98xf32, #tpu.memory_space<smem>>, %arg2: memref<1x4x16x16xf32, #tpu.memory_space<vmem>>, %arg3: memref<4x4xf32, #tpu.memory_space<vmem>>, %arg4: memref<4x1xf32, #tpu.memory_space<vmem>>, %arg5: memref<1x4x16x16xf32, #tpu.memory_space<vmem>>, %arg6: memref<2x22x22xf32, #tpu.memory_space<vmem>>) attributes {dimension_semantics = [#tpu.dimension_semantics<parallel>], iteration_bounds = array<i64: 2>, scalar_prefetch = 1 : i64, scratch_operands = 1 : i64, tpu.core_type = #tpu.core_type<tc>, window_params = [{transform_indices = @transform_0, window_bounds = array<i64: 1, 4, 16, 16>}, {pipeline_mode = #tpu.pipeline_mode<synchronous>, transform_indices = @transform_1, window_bounds = array<i64: 4, 4>}, {pipeline_mode = #tpu.pipeline_mode<synchronous>, transform_indices = @transform_2, window_bounds = array<i64: 4, 1>}, {transform_indices = @transform_3, window_bounds = array<i64: 1, 4, 16, 16>}]} {
    %c0 = arith.constant 0 : index
    %c0_0 = arith.constant 0 : index
    %c0_1 = arith.constant 0 : index
    %c0_2 = arith.constant 0 : index
    %0 = vector.load %arg2[%c0, %c0_0, %c0_1, %c0_2] : memref<1x4x16x16xf32, #tpu.memory_space<vmem>>, vector<1x4x16x16xf32>
    %1 = vector.shape_cast %0 : vector<1x4x16x16xf32> to vector<4x16x16xf32>
    %cst = arith.constant dense<0.000000e+00> : vector<4x16xf32>
    %2 = vector.multi_reduction <add>, %1, %cst [2] : vector<4x16x16xf32> to vector<4x16xf32>
    %cst_3 = arith.constant dense<0.000000e+00> : vector<4xf32>
    %3 = vector.multi_reduction <add>, %2, %cst_3 [1] : vector<4x16xf32> to vector<4xf32>
    %4 = vector.shape_cast %3 : vector<4xf32> to vector<4x1xf32>
    %cst_4 = arith.constant 3.906250e-03 : f32
    %5 = vector.broadcast %cst_4 : f32 to vector<4x1xf32>
    %6 = arith.mulf %4, %5 : vector<4x1xf32>
    %c0_5 = arith.constant 0 : index
    %c0_6 = arith.constant 0 : index
    %7 = vector.load %arg3[%c0_5, %c0_6] : memref<4x4xf32, #tpu.memory_space<vmem>>, vector<4x4xf32>
    %cst_7 = arith.constant dense<0.000000e+00> : vector<4x1xf32>
    %8 = tpu.matmul %7, %6, %cst_7 {dimension_numbers = #tpu.dot_dimension_numbers<[1], [0], [0], [1], [0, 0, 1, 1], [], []>} : vector<4x4xf32>, vector<4x1xf32>, vector<4x1xf32> -> vector<4x1xf32>
    %c0_8 = arith.constant 0 : index
    %c0_9 = arith.constant 0 : index
    %9 = vector.load %arg4[%c0_8, %c0_9] : memref<4x1xf32, #tpu.memory_space<vmem>>, vector<4x1xf32>
    %10 = arith.addf %8, %9 : vector<4x1xf32>
    %11 = arith.negf %10 : vector<4x1xf32>
    %12 = math.exp %11 : vector<4x1xf32>
    %cst_10 = arith.constant 1.000000e+00 : f32
    %13 = vector.broadcast %cst_10 : f32 to vector<4x1xf32>
    %14 = arith.addf %13, %12 : vector<4x1xf32>
    %15 = arith.divf %13, %14 : vector<4x1xf32>
    %16 = vector.shape_cast %15 : vector<4x1xf32> to vector<4x1x1xf32>
    %17 = vector.broadcast %16 : vector<4x1x1xf32> to vector<4x16x16xf32>
    %18 = arith.mulf %1, %17 : vector<4x16x16xf32>
    %cst_11 = arith.constant dense<0.000000e+00> : vector<16x16xf32>
    %19 = vector.multi_reduction <add>, %18, %cst_11 [0] : vector<4x16x16xf32> to vector<16x16xf32>
    %cst_12 = arith.constant 4.000000e+00 : f32
    %20 = vector.broadcast %cst_12 : f32 to vector<16x16xf32>
    %21 = arith.divf %19, %20 : vector<16x16xf32>
    %cst_13 = arith.constant dense<0xFF800000> : vector<16x16xf32>
    %22 = vector.multi_reduction <maximumf>, %18, %cst_13 [0] : vector<4x16x16xf32> to vector<16x16xf32>
    %cst_14 = arith.constant 0.000000e+00 : f32
    %23 = vector.broadcast %cst_14 : f32 to vector<2x22x22xf32>
    %c0_15 = arith.constant 0 : index
    %c0_16 = arith.constant 0 : index
    %c0_17 = arith.constant 0 : index
    %24 = vector.load %arg6[%c0_15, %c0_16, %c0_17] : memref<2x22x22xf32, #tpu.memory_space<vmem>>, vector<2x22x22xf32>
    tpu.vector_store %arg6[%c0_15, %c0_16, %c0_17], %23 {strides = array<i32>} : memref<2x22x22xf32, #tpu.memory_space<vmem>>, vector<2x22x22xf32>,
    %c0_18 = arith.constant 0 : index
    %c3 = arith.constant 3 : index
    %c3_19 = arith.constant 3 : index
    %25 = vector.load %arg6[%c0_18, %c3, %c3_19] : memref<2x22x22xf32, #tpu.memory_space<vmem>>, vector<1x16x16xf32>
    %26 = vector.shape_cast %25 : vector<1x16x16xf32> to vector<16x16xf32>
    %27 = vector.shape_cast %21 : vector<16x16xf32> to vector<1x16x16xf32>
    tpu.vector_store %arg6[%c0_18, %c3, %c3_19], %27 {strides = array<i32>} : memref<2x22x22xf32, #tpu.memory_space<vmem>>, vector<1x16x16xf32>,
    %c1 = arith.constant 1 : index
    %c3_20 = arith.constant 3 : index
    %c3_21 = arith.constant 3 : index
    %28 = vector.load %arg6[%c1, %c3_20, %c3_21] : memref<2x22x22xf32, #tpu.memory_space<vmem>>, vector<1x16x16xf32>
    %29 = vector.shape_cast %28 : vector<1x16x16xf32> to vector<16x16xf32>
    %30 = vector.shape_cast %22 : vector<16x16xf32> to vector<1x16x16xf32>
    tpu.vector_store %arg6[%c1, %c3_20, %c3_21], %30 {strides = array<i32>} : memref<2x22x22xf32, #tpu.memory_space<vmem>>, vector<1x16x16xf32>,
    %cst_22 = arith.constant 0.000000e+00 : f32
    %31 = vector.broadcast %cst_22 : f32 to vector<16x16xf32>
    %c0_23 = arith.constant 0 : index
    %c0_24 = arith.constant 0 : index
    %c0_25 = arith.constant 0 : index
    %32 = vector.load %arg6[%c0_23, %c0_24, %c0_25] : memref<2x22x22xf32, #tpu.memory_space<vmem>>, vector<1x16x22xf32>
    %33 = vector.shape_cast %32 : vector<1x16x22xf32> to vector<16x22xf32>
    %c0_26 = arith.constant 0 : index
    %34 = memref.load %arg1[%c0_26] : memref<98xf32, #tpu.memory_space<smem>>
    %35 = vector.extract_strided_slice %33 {offsets = [0, 0], sizes = [16, 16], strides = [1, 1]} : vector<16x22xf32> to vector<16x16xf32>
    %36 = vector.broadcast %34 : f32 to vector<16x16xf32>
    %37 = arith.mulf %36, %35 : vector<16x16xf32>
    %38 = arith.addf %31, %37 : vector<16x16xf32>
    %c1_27 = arith.constant 1 : index
    %39 = memref.load %arg1[%c1_27] : memref<98xf32, #tpu.memory_space<smem>>
    %40 = vector.extract_strided_slice %33 {offsets = [0, 1], sizes = [16, 16], strides = [1, 1]} : vector<16x22xf32> to vector<16x16xf32>
    %41 = vector.broadcast %39 : f32 to vector<16x16xf32>
    %42 = arith.mulf %41, %40 : vector<16x16xf32>
    %43 = arith.addf %38, %42 : vector<16x16xf32>
    %c2 = arith.constant 2 : index
    %44 = memref.load %arg1[%c2] : memref<98xf32, #tpu.memory_space<smem>>
    %45 = vector.extract_strided_slice %33 {offsets = [0, 2], sizes = [16, 16], strides = [1, 1]} : vector<16x22xf32> to vector<16x16xf32>
    %46 = vector.broadcast %44 : f32 to vector<16x16xf32>
    %47 = arith.mulf %46, %45 : vector<16x16xf32>
    %48 = arith.addf %43, %47 : vector<16x16xf32>
    %c3_28 = arith.constant 3 : index
    %49 = memref.load %arg1[%c3_28] : memref<98xf32, #tpu.memory_space<smem>>
    %50 = vector.extract_strided_slice %33 {offsets = [0, 3], sizes = [16, 16], strides = [1, 1]} : vector<16x22xf32> to vector<16x16xf32>
    %51 = vector.broadcast %49 : f32 to vector<16x16xf32>
    %52 = arith.mulf %51, %50 : vector<16x16xf32>
    %53 = arith.addf %48, %52 : vector<16x16xf32>
    %c4 = arith.constant 4 : index
    %54 = memref.load %arg1[%c4] : memref<98xf32, #tpu.memory_space<smem>>
    %55 = vector.extract_strided_slice %33 {offsets = [0, 4], sizes = [16, 16], strides = [1, 1]} : vector<16x22xf32> to vector<16x16xf32>
    %56 = vector.broadcast %54 : f32 to vector<16x16xf32>
    %57 = arith.mulf %56, %55 : vector<16x16xf32>
    %58 = arith.addf %53, %57 : vector<16x16xf32>
    %c5 = arith.constant 5 : index
    %59 = memref.load %arg1[%c5] : memref<98xf32, #tpu.memory_space<smem>>
    %60 = vector.extract_strided_slice %33 {offsets = [0, 5], sizes = [16, 16], strides = [1, 1]} : vector<16x22xf32> to vector<16x16xf32>
    %61 = vector.broadcast %59 : f32 to vector<16x16xf32>
    %62 = arith.mulf %61, %60 : vector<16x16xf32>
    %63 = arith.addf %58, %62 : vector<16x16xf32>
    %c6 = arith.constant 6 : index
    %64 = memref.load %arg1[%c6] : memref<98xf32, #tpu.memory_space<smem>>
    %65 = vector.extract_strided_slice %33 {offsets = [0, 6], sizes = [16, 16], strides = [1, 1]} : vector<16x22xf32> to vector<16x16xf32>
    %66 = vector.broadcast %64 : f32 to vector<16x16xf32>
    %67 = arith.mulf %66, %65 : vector<16x16xf32>
    %68 = arith.addf %63, %67 : vector<16x16xf32>
    %c0_29 = arith.constant 0 : index
    %c1_30 = arith.constant 1 : index
    %c0_31 = arith.constant 0 : index
    %69 = vector.load %arg6[%c0_29, %c1_30, %c0_31] : memref<2x22x22xf32, #tpu.memory_space<vmem>>, vector<1x16x22xf32>
    %70 = vector.shape_cast %69 : vector<1x16x22xf32> to vector<16x22xf32>
    %c7 = arith.constant 7 : index
    %71 = memref.load %arg1[%c7] : memref<98xf32, #tpu.memory_space<smem>>
    %72 = vector.extract_strided_slice %70 {offsets = [0, 0], sizes = [16, 16], strides = [1, 1]} : vector<16x22xf32> to vector<16x16xf32>
    %73 = vector.broadcast %71 : f32 to vector<16x16xf32>
    %74 = arith.mulf %73, %72 : vector<16x16xf32>
    %75 = arith.addf %68, %74 : vector<16x16xf32>
    %c8 = arith.constant 8 : index
    %76 = memref.load %arg1[%c8] : memref<98xf32, #tpu.memory_space<smem>>
    %77 = vector.extract_strided_slice %70 {offsets = [0, 1], sizes = [16, 16], strides = [1, 1]} : vector<16x22xf32> to vector<16x16xf32>
    %78 = vector.broadcast %76 : f32 to vector<16x16xf32>
    %79 = arith.mulf %78, %77 : vector<16x16xf32>
    %80 = arith.addf %75, %79 : vector<16x16xf32>
    %c9 = arith.constant 9 : index
    %81 = memref.load %arg1[%c9] : memref<98xf32, #tpu.memory_space<smem>>
    %82 = vector.extract_strided_slice %70 {offsets = [0, 2], sizes = [16, 16], strides = [1, 1]} : vector<16x22xf32> to vector<16x16xf32>
    %83 = vector.broadcast %81 : f32 to vector<16x16xf32>
    %84 = arith.mulf %83, %82 : vector<16x16xf32>
    %85 = arith.addf %80, %84 : vector<16x16xf32>
    %c10 = arith.constant 10 : index
    %86 = memref.load %arg1[%c10] : memref<98xf32, #tpu.memory_space<smem>>
    %87 = vector.extract_strided_slice %70 {offsets = [0, 3], sizes = [16, 16], strides = [1, 1]} : vector<16x22xf32> to vector<16x16xf32>
    %88 = vector.broadcast %86 : f32 to vector<16x16xf32>
    %89 = arith.mulf %88, %87 : vector<16x16xf32>
    %90 = arith.addf %85, %89 : vector<16x16xf32>
    %c11 = arith.constant 11 : index
    %91 = memref.load %arg1[%c11] : memref<98xf32, #tpu.memory_space<smem>>
    %92 = vector.extract_strided_slice %70 {offsets = [0, 4], sizes = [16, 16], strides = [1, 1]} : vector<16x22xf32> to vector<16x16xf32>
    %93 = vector.broadcast %91 : f32 to vector<16x16xf32>
    %94 = arith.mulf %93, %92 : vector<16x16xf32>
    %95 = arith.addf %90, %94 : vector<16x16xf32>
    %c12 = arith.constant 12 : index
    %96 = memref.load %arg1[%c12] : memref<98xf32, #tpu.memory_space<smem>>
    %97 = vector.extract_strided_slice %70 {offsets = [0, 5], sizes = [16, 16], strides = [1, 1]} : vector<16x22xf32> to vector<16x16xf32>
    %98 = vector.broadcast %96 : f32 to vector<16x16xf32>
    %99 = arith.mulf %98, %97 : vector<16x16xf32>
    %100 = arith.addf %95, %99 : vector<16x16xf32>
    %c13 = arith.constant 13 : index
    %101 = memref.load %arg1[%c13] : memref<98xf32, #tpu.memory_space<smem>>
    %102 = vector.extract_strided_slice %70 {offsets = [0, 6], sizes = [16, 16], strides = [1, 1]} : vector<16x22xf32> to vector<16x16xf32>
    %103 = vector.broadcast %101 : f32 to vector<16x16xf32>
    %104 = arith.mulf %103, %102 : vector<16x16xf32>
    %105 = arith.addf %100, %104 : vector<16x16xf32>
    %c0_32 = arith.constant 0 : index
    %c2_33 = arith.constant 2 : index
    %c0_34 = arith.constant 0 : index
    %106 = vector.load %arg6[%c0_32, %c2_33, %c0_34] : memref<2x22x22xf32, #tpu.memory_space<vmem>>, vector<1x16x22xf32>
    %107 = vector.shape_cast %106 : vector<1x16x22xf32> to vector<16x22xf32>
    %c14 = arith.constant 14 : index
    %108 = memref.load %arg1[%c14] : memref<98xf32, #tpu.memory_space<smem>>
    %109 = vector.extract_strided_slice %107 {offsets = [0, 0], sizes = [16, 16], strides = [1, 1]} : vector<16x22xf32> to vector<16x16xf32>
    %110 = vector.broadcast %108 : f32 to vector<16x16xf32>
    %111 = arith.mulf %110, %109 : vector<16x16xf32>
    %112 = arith.addf %105, %111 : vector<16x16xf32>
    %c15 = arith.constant 15 : index
    %113 = memref.load %arg1[%c15] : memref<98xf32, #tpu.memory_space<smem>>
    %114 = vector.extract_strided_slice %107 {offsets = [0, 1], sizes = [16, 16], strides = [1, 1]} : vector<16x22xf32> to vector<16x16xf32>
    %115 = vector.broadcast %113 : f32 to vector<16x16xf32>
    %116 = arith.mulf %115, %114 : vector<16x16xf32>
    %117 = arith.addf %112, %116 : vector<16x16xf32>
    %c16 = arith.constant 16 : index
    %118 = memref.load %arg1[%c16] : memref<98xf32, #tpu.memory_space<smem>>
    %119 = vector.extract_strided_slice %107 {offsets = [0, 2], sizes = [16, 16], strides = [1, 1]} : vector<16x22xf32> to vector<16x16xf32>
    %120 = vector.broadcast %118 : f32 to vector<16x16xf32>
    %121 = arith.mulf %120, %119 : vector<16x16xf32>
    %122 = arith.addf %117, %121 : vector<16x16xf32>
    %c17 = arith.constant 17 : index
    %123 = memref.load %arg1[%c17] : memref<98xf32, #tpu.memory_space<smem>>
    %124 = vector.extract_strided_slice %107 {offsets = [0, 3], sizes = [16, 16], strides = [1, 1]} : vector<16x22xf32> to vector<16x16xf32>
    %125 = vector.broadcast %123 : f32 to vector<16x16xf32>
    %126 = arith.mulf %125, %124 : vector<16x16xf32>
    %127 = arith.addf %122, %126 : vector<16x16xf32>
    %c18 = arith.constant 18 : index
    %128 = memref.load %arg1[%c18] : memref<98xf32, #tpu.memory_space<smem>>
    %129 = vector.extract_strided_slice %107 {offsets = [0, 4], sizes = [16, 16], strides = [1, 1]} : vector<16x22xf32> to vector<16x16xf32>
    %130 = vector.broadcast %128 : f32 to vector<16x16xf32>
    %131 = arith.mulf %130, %129 : vector<16x16xf32>
    %132 = arith.addf %127, %131 : vector<16x16xf32>
    %c19 = arith.constant 19 : index
    %133 = memref.load %arg1[%c19] : memref<98xf32, #tpu.memory_space<smem>>
    %134 = vector.extract_strided_slice %107 {offsets = [0, 5], sizes = [16, 16], strides = [1, 1]} : vector<16x22xf32> to vector<16x16xf32>
    %135 = vector.broadcast %133 : f32 to vector<16x16xf32>
    %136 = arith.mulf %135, %134 : vector<16x16xf32>
    %137 = arith.addf %132, %136 : vector<16x16xf32>
    %c20 = arith.constant 20 : index
    %138 = memref.load %arg1[%c20] : memref<98xf32, #tpu.memory_space<smem>>
    %139 = vector.extract_strided_slice %107 {offsets = [0, 6], sizes = [16, 16], strides = [1, 1]} : vector<16x22xf32> to vector<16x16xf32>
    %140 = vector.broadcast %138 : f32 to vector<16x16xf32>
    %141 = arith.mulf %140, %139 : vector<16x16xf32>
    %142 = arith.addf %137, %141 : vector<16x16xf32>
    %c0_35 = arith.constant 0 : index
    %c3_36 = arith.constant 3 : index
    %c0_37 = arith.constant 0 : index
    %143 = vector.load %arg6[%c0_35, %c3_36, %c0_37] : memref<2x22x22xf32, #tpu.memory_space<vmem>>, vector<1x16x22xf32>
    %144 = vector.shape_cast %143 : vector<1x16x22xf32> to vector<16x22xf32>
    %c21 = arith.constant 21 : index
    %145 = memref.load %arg1[%c21] : memref<98xf32, #tpu.memory_space<smem>>
    %146 = vector.extract_strided_slice %144 {offsets = [0, 0], sizes = [16, 16], strides = [1, 1]} : vector<16x22xf32> to vector<16x16xf32>
    %147 = vector.broadcast %145 : f32 to vector<16x16xf32>
    %148 = arith.mulf %147, %146 : vector<16x16xf32>
    %149 = arith.addf %142, %148 : vector<16x16xf32>
    %c22 = arith.constant 22 : index
    %150 = memref.load %arg1[%c22] : memref<98xf32, #tpu.memory_space<smem>>
    %151 = vector.extract_strided_slice %144 {offsets = [0, 1], sizes = [16, 16], strides = [1, 1]} : vector<16x22xf32> to vector<16x16xf32>
    %152 = vector.broadcast %150 : f32 to vector<16x16xf32>
    %153 = arith.mulf %152, %151 : vector<16x16xf32>
    %154 = arith.addf %149, %153 : vector<16x16xf32>
    %c23 = arith.constant 23 : index
    %155 = memref.load %arg1[%c23] : memref<98xf32, #tpu.memory_space<smem>>
    %156 = vector.extract_strided_slice %144 {offsets = [0, 2], sizes = [16, 16], strides = [1, 1]} : vector<16x22xf32> to vector<16x16xf32>
    %157 = vector.broadcast %155 : f32 to vector<16x16xf32>
    %158 = arith.mulf %157, %156 : vector<16x16xf32>
    %159 = arith.addf %154, %158 : vector<16x16xf32>
    %c24 = arith.constant 24 : index
    %160 = memref.load %arg1[%c24] : memref<98xf32, #tpu.memory_space<smem>>
    %161 = vector.extract_strided_slice %144 {offsets = [0, 3], sizes = [16, 16], strides = [1, 1]} : vector<16x22xf32> to vector<16x16xf32>
    %162 = vector.broadcast %160 : f32 to vector<16x16xf32>
    %163 = arith.mulf %162, %161 : vector<16x16xf32>
    %164 = arith.addf %159, %163 : vector<16x16xf32>
    %c25 = arith.constant 25 : index
    %165 = memref.load %arg1[%c25] : memref<98xf32, #tpu.memory_space<smem>>
    %166 = vector.extract_strided_slice %144 {offsets = [0, 4], sizes = [16, 16], strides = [1, 1]} : vector<16x22xf32> to vector<16x16xf32>
    %167 = vector.broadcast %165 : f32 to vector<16x16xf32>
    %168 = arith.mulf %167, %166 : vector<16x16xf32>
    %169 = arith.addf %164, %168 : vector<16x16xf32>
    %c26 = arith.constant 26 : index
    %170 = memref.load %arg1[%c26] : memref<98xf32, #tpu.memory_space<smem>>
    %171 = vector.extract_strided_slice %144 {offsets = [0, 5], sizes = [16, 16], strides = [1, 1]} : vector<16x22xf32> to vector<16x16xf32>
    %172 = vector.broadcast %170 : f32 to vector<16x16xf32>
    %173 = arith.mulf %172, %171 : vector<16x16xf32>
    %174 = arith.addf %169, %173 : vector<16x16xf32>
    %c27 = arith.constant 27 : index
    %175 = memref.load %arg1[%c27] : memref<98xf32, #tpu.memory_space<smem>>
    %176 = vector.extract_strided_slice %144 {offsets = [0, 6], sizes = [16, 16], strides = [1, 1]} : vector<16x22xf32> to vector<16x16xf32>
    %177 = vector.broadcast %175 : f32 to vector<16x16xf32>
    %178 = arith.mulf %177, %176 : vector<16x16xf32>
    %179 = arith.addf %174, %178 : vector<16x16xf32>
    %c0_38 = arith.constant 0 : index
    %c4_39 = arith.constant 4 : index
    %c0_40 = arith.constant 0 : index
    %180 = vector.load %arg6[%c0_38, %c4_39, %c0_40] : memref<2x22x22xf32, #tpu.memory_space<vmem>>, vector<1x16x22xf32>
    %181 = vector.shape_cast %180 : vector<1x16x22xf32> to vector<16x22xf32>
    %c28 = arith.constant 28 : index
    %182 = memref.load %arg1[%c28] : memref<98xf32, #tpu.memory_space<smem>>
    %183 = vector.extract_strided_slice %181 {offsets = [0, 0], sizes = [16, 16], strides = [1, 1]} : vector<16x22xf32> to vector<16x16xf32>
    %184 = vector.broadcast %182 : f32 to vector<16x16xf32>
    %185 = arith.mulf %184, %183 : vector<16x16xf32>
    %186 = arith.addf %179, %185 : vector<16x16xf32>
    %c29 = arith.constant 29 : index
    %187 = memref.load %arg1[%c29] : memref<98xf32, #tpu.memory_space<smem>>
    %188 = vector.extract_strided_slice %181 {offsets = [0, 1], sizes = [16, 16], strides = [1, 1]} : vector<16x22xf32> to vector<16x16xf32>
    %189 = vector.broadcast %187 : f32 to vector<16x16xf32>
    %190 = arith.mulf %189, %188 : vector<16x16xf32>
    %191 = arith.addf %186, %190 : vector<16x16xf32>
    %c30 = arith.constant 30 : index
    %192 = memref.load %arg1[%c30] : memref<98xf32, #tpu.memory_space<smem>>
    %193 = vector.extract_strided_slice %181 {offsets = [0, 2], sizes = [16, 16], strides = [1, 1]} : vector<16x22xf32> to vector<16x16xf32>
    %194 = vector.broadcast %192 : f32 to vector<16x16xf32>
    %195 = arith.mulf %194, %193 : vector<16x16xf32>
    %196 = arith.addf %191, %195 : vector<16x16xf32>
    %c31 = arith.constant 31 : index
    %197 = memref.load %arg1[%c31] : memref<98xf32, #tpu.memory_space<smem>>
    %198 = vector.extract_strided_slice %181 {offsets = [0, 3], sizes = [16, 16], strides = [1, 1]} : vector<16x22xf32> to vector<16x16xf32>
    %199 = vector.broadcast %197 : f32 to vector<16x16xf32>
    %200 = arith.mulf %199, %198 : vector<16x16xf32>
    %201 = arith.addf %196, %200 : vector<16x16xf32>
    %c32 = arith.constant 32 : index
    %202 = memref.load %arg1[%c32] : memref<98xf32, #tpu.memory_space<smem>>
    %203 = vector.extract_strided_slice %181 {offsets = [0, 4], sizes = [16, 16], strides = [1, 1]} : vector<16x22xf32> to vector<16x16xf32>
    %204 = vector.broadcast %202 : f32 to vector<16x16xf32>
    %205 = arith.mulf %204, %203 : vector<16x16xf32>
    %206 = arith.addf %201, %205 : vector<16x16xf32>
    %c33 = arith.constant 33 : index
    %207 = memref.load %arg1[%c33] : memref<98xf32, #tpu.memory_space<smem>>
    %208 = vector.extract_strided_slice %181 {offsets = [0, 5], sizes = [16, 16], strides = [1, 1]} : vector<16x22xf32> to vector<16x16xf32>
    %209 = vector.broadcast %207 : f32 to vector<16x16xf32>
    %210 = arith.mulf %209, %208 : vector<16x16xf32>
    %211 = arith.addf %206, %210 : vector<16x16xf32>
    %c34 = arith.constant 34 : index
    %212 = memref.load %arg1[%c34] : memref<98xf32, #tpu.memory_space<smem>>
    %213 = vector.extract_strided_slice %181 {offsets = [0, 6], sizes = [16, 16], strides = [1, 1]} : vector<16x22xf32> to vector<16x16xf32>
    %214 = vector.broadcast %212 : f32 to vector<16x16xf32>
    %215 = arith.mulf %214, %213 : vector<16x16xf32>
    %216 = arith.addf %211, %215 : vector<16x16xf32>
    %c0_41 = arith.constant 0 : index
    %c5_42 = arith.constant 5 : index
    %c0_43 = arith.constant 0 : index
    %217 = vector.load %arg6[%c0_41, %c5_42, %c0_43] : memref<2x22x22xf32, #tpu.memory_space<vmem>>, vector<1x16x22xf32>
    %218 = vector.shape_cast %217 : vector<1x16x22xf32> to vector<16x22xf32>
    %c35 = arith.constant 35 : index
    %219 = memref.load %arg1[%c35] : memref<98xf32, #tpu.memory_space<smem>>
    %220 = vector.extract_strided_slice %218 {offsets = [0, 0], sizes = [16, 16], strides = [1, 1]} : vector<16x22xf32> to vector<16x16xf32>
    %221 = vector.broadcast %219 : f32 to vector<16x16xf32>
    %222 = arith.mulf %221, %220 : vector<16x16xf32>
    %223 = arith.addf %216, %222 : vector<16x16xf32>
    %c36 = arith.constant 36 : index
    %224 = memref.load %arg1[%c36] : memref<98xf32, #tpu.memory_space<smem>>
    %225 = vector.extract_strided_slice %218 {offsets = [0, 1], sizes = [16, 16], strides = [1, 1]} : vector<16x22xf32> to vector<16x16xf32>
    %226 = vector.broadcast %224 : f32 to vector<16x16xf32>
    %227 = arith.mulf %226, %225 : vector<16x16xf32>
    %228 = arith.addf %223, %227 : vector<16x16xf32>
    %c37 = arith.constant 37 : index
    %229 = memref.load %arg1[%c37] : memref<98xf32, #tpu.memory_space<smem>>
    %230 = vector.extract_strided_slice %218 {offsets = [0, 2], sizes = [16, 16], strides = [1, 1]} : vector<16x22xf32> to vector<16x16xf32>
    %231 = vector.broadcast %229 : f32 to vector<16x16xf32>
    %232 = arith.mulf %231, %230 : vector<16x16xf32>
    %233 = arith.addf %228, %232 : vector<16x16xf32>
    %c38 = arith.constant 38 : index
    %234 = memref.load %arg1[%c38] : memref<98xf32, #tpu.memory_space<smem>>
    %235 = vector.extract_strided_slice %218 {offsets = [0, 3], sizes = [16, 16], strides = [1, 1]} : vector<16x22xf32> to vector<16x16xf32>
    %236 = vector.broadcast %234 : f32 to vector<16x16xf32>
    %237 = arith.mulf %236, %235 : vector<16x16xf32>
    %238 = arith.addf %233, %237 : vector<16x16xf32>
    %c39 = arith.constant 39 : index
    %239 = memref.load %arg1[%c39] : memref<98xf32, #tpu.memory_space<smem>>
    %240 = vector.extract_strided_slice %218 {offsets = [0, 4], sizes = [16, 16], strides = [1, 1]} : vector<16x22xf32> to vector<16x16xf32>
    %241 = vector.broadcast %239 : f32 to vector<16x16xf32>
    %242 = arith.mulf %241, %240 : vector<16x16xf32>
    %243 = arith.addf %238, %242 : vector<16x16xf32>
    %c40 = arith.constant 40 : index
    %244 = memref.load %arg1[%c40] : memref<98xf32, #tpu.memory_space<smem>>
    %245 = vector.extract_strided_slice %218 {offsets = [0, 5], sizes = [16, 16], strides = [1, 1]} : vector<16x22xf32> to vector<16x16xf32>
    %246 = vector.broadcast %244 : f32 to vector<16x16xf32>
    %247 = arith.mulf %246, %245 : vector<16x16xf32>
    %248 = arith.addf %243, %247 : vector<16x16xf32>
    %c41 = arith.constant 41 : index
    %249 = memref.load %arg1[%c41] : memref<98xf32, #tpu.memory_space<smem>>
    %250 = vector.extract_strided_slice %218 {offsets = [0, 6], sizes = [16, 16], strides = [1, 1]} : vector<16x22xf32> to vector<16x16xf32>
    %251 = vector.broadcast %249 : f32 to vector<16x16xf32>
    %252 = arith.mulf %251, %250 : vector<16x16xf32>
    %253 = arith.addf %248, %252 : vector<16x16xf32>
    %c0_44 = arith.constant 0 : index
    %c6_45 = arith.constant 6 : index
    %c0_46 = arith.constant 0 : index
    %254 = vector.load %arg6[%c0_44, %c6_45, %c0_46] : memref<2x22x22xf32, #tpu.memory_space<vmem>>, vector<1x16x22xf32>
    %255 = vector.shape_cast %254 : vector<1x16x22xf32> to vector<16x22xf32>
    %c42 = arith.constant 42 : index
    %256 = memref.load %arg1[%c42] : memref<98xf32, #tpu.memory_space<smem>>
    %257 = vector.extract_strided_slice %255 {offsets = [0, 0], sizes = [16, 16], strides = [1, 1]} : vector<16x22xf32> to vector<16x16xf32>
    %258 = vector.broadcast %256 : f32 to vector<16x16xf32>
    %259 = arith.mulf %258, %257 : vector<16x16xf32>
    %260 = arith.addf %253, %259 : vector<16x16xf32>
    %c43 = arith.constant 43 : index
    %261 = memref.load %arg1[%c43] : memref<98xf32, #tpu.memory_space<smem>>
    %262 = vector.extract_strided_slice %255 {offsets = [0, 1], sizes = [16, 16], strides = [1, 1]} : vector<16x22xf32> to vector<16x16xf32>
    %263 = vector.broadcast %261 : f32 to vector<16x16xf32>
    %264 = arith.mulf %263, %262 : vector<16x16xf32>
    %265 = arith.addf %260, %264 : vector<16x16xf32>
    %c44 = arith.constant 44 : index
    %266 = memref.load %arg1[%c44] : memref<98xf32, #tpu.memory_space<smem>>
    %267 = vector.extract_strided_slice %255 {offsets = [0, 2], sizes = [16, 16], strides = [1, 1]} : vector<16x22xf32> to vector<16x16xf32>
    %268 = vector.broadcast %266 : f32 to vector<16x16xf32>
    %269 = arith.mulf %268, %267 : vector<16x16xf32>
    %270 = arith.addf %265, %269 : vector<16x16xf32>
    %c45 = arith.constant 45 : index
    %271 = memref.load %arg1[%c45] : memref<98xf32, #tpu.memory_space<smem>>
    %272 = vector.extract_strided_slice %255 {offsets = [0, 3], sizes = [16, 16], strides = [1, 1]} : vector<16x22xf32> to vector<16x16xf32>
    %273 = vector.broadcast %271 : f32 to vector<16x16xf32>
    %274 = arith.mulf %273, %272 : vector<16x16xf32>
    %275 = arith.addf %270, %274 : vector<16x16xf32>
    %c46 = arith.constant 46 : index
    %276 = memref.load %arg1[%c46] : memref<98xf32, #tpu.memory_space<smem>>
    %277 = vector.extract_strided_slice %255 {offsets = [0, 4], sizes = [16, 16], strides = [1, 1]} : vector<16x22xf32> to vector<16x16xf32>
    %278 = vector.broadcast %276 : f32 to vector<16x16xf32>
    %279 = arith.mulf %278, %277 : vector<16x16xf32>
    %280 = arith.addf %275, %279 : vector<16x16xf32>
    %c47 = arith.constant 47 : index
    %281 = memref.load %arg1[%c47] : memref<98xf32, #tpu.memory_space<smem>>
    %282 = vector.extract_strided_slice %255 {offsets = [0, 5], sizes = [16, 16], strides = [1, 1]} : vector<16x22xf32> to vector<16x16xf32>
    %283 = vector.broadcast %281 : f32 to vector<16x16xf32>
    %284 = arith.mulf %283, %282 : vector<16x16xf32>
    %285 = arith.addf %280, %284 : vector<16x16xf32>
    %c48 = arith.constant 48 : index
    %286 = memref.load %arg1[%c48] : memref<98xf32, #tpu.memory_space<smem>>
    %287 = vector.extract_strided_slice %255 {offsets = [0, 6], sizes = [16, 16], strides = [1, 1]} : vector<16x22xf32> to vector<16x16xf32>
    %288 = vector.broadcast %286 : f32 to vector<16x16xf32>
    %289 = arith.mulf %288, %287 : vector<16x16xf32>
    %290 = arith.addf %285, %289 : vector<16x16xf32>
    %c1_47 = arith.constant 1 : index
    %c0_48 = arith.constant 0 : index
    %c0_49 = arith.constant 0 : index
    %291 = vector.load %arg6[%c1_47, %c0_48, %c0_49] : memref<2x22x22xf32, #tpu.memory_space<vmem>>, vector<1x16x22xf32>
    %292 = vector.shape_cast %291 : vector<1x16x22xf32> to vector<16x22xf32>
    %c49 = arith.constant 49 : index
    %293 = memref.load %arg1[%c49] : memref<98xf32, #tpu.memory_space<smem>>
    %294 = vector.extract_strided_slice %292 {offsets = [0, 0], sizes = [16, 16], strides = [1, 1]} : vector<16x22xf32> to vector<16x16xf32>
    %295 = vector.broadcast %293 : f32 to vector<16x16xf32>
    %296 = arith.mulf %295, %294 : vector<16x16xf32>
    %297 = arith.addf %290, %296 : vector<16x16xf32>
    %c50 = arith.constant 50 : index
    %298 = memref.load %arg1[%c50] : memref<98xf32, #tpu.memory_space<smem>>
    %299 = vector.extract_strided_slice %292 {offsets = [0, 1], sizes = [16, 16], strides = [1, 1]} : vector<16x22xf32> to vector<16x16xf32>
    %300 = vector.broadcast %298 : f32 to vector<16x16xf32>
    %301 = arith.mulf %300, %299 : vector<16x16xf32>
    %302 = arith.addf %297, %301 : vector<16x16xf32>
    %c51 = arith.constant 51 : index
    %303 = memref.load %arg1[%c51] : memref<98xf32, #tpu.memory_space<smem>>
    %304 = vector.extract_strided_slice %292 {offsets = [0, 2], sizes = [16, 16], strides = [1, 1]} : vector<16x22xf32> to vector<16x16xf32>
    %305 = vector.broadcast %303 : f32 to vector<16x16xf32>
    %306 = arith.mulf %305, %304 : vector<16x16xf32>
    %307 = arith.addf %302, %306 : vector<16x16xf32>
    %c52 = arith.constant 52 : index
    %308 = memref.load %arg1[%c52] : memref<98xf32, #tpu.memory_space<smem>>
    %309 = vector.extract_strided_slice %292 {offsets = [0, 3], sizes = [16, 16], strides = [1, 1]} : vector<16x22xf32> to vector<16x16xf32>
    %310 = vector.broadcast %308 : f32 to vector<16x16xf32>
    %311 = arith.mulf %310, %309 : vector<16x16xf32>
    %312 = arith.addf %307, %311 : vector<16x16xf32>
    %c53 = arith.constant 53 : index
    %313 = memref.load %arg1[%c53] : memref<98xf32, #tpu.memory_space<smem>>
    %314 = vector.extract_strided_slice %292 {offsets = [0, 4], sizes = [16, 16], strides = [1, 1]} : vector<16x22xf32> to vector<16x16xf32>
    %315 = vector.broadcast %313 : f32 to vector<16x16xf32>
    %316 = arith.mulf %315, %314 : vector<16x16xf32>
    %317 = arith.addf %312, %316 : vector<16x16xf32>
    %c54 = arith.constant 54 : index
    %318 = memref.load %arg1[%c54] : memref<98xf32, #tpu.memory_space<smem>>
    %319 = vector.extract_strided_slice %292 {offsets = [0, 5], sizes = [16, 16], strides = [1, 1]} : vector<16x22xf32> to vector<16x16xf32>
    %320 = vector.broadcast %318 : f32 to vector<16x16xf32>
    %321 = arith.mulf %320, %319 : vector<16x16xf32>
    %322 = arith.addf %317, %321 : vector<16x16xf32>
    %c55 = arith.constant 55 : index
    %323 = memref.load %arg1[%c55] : memref<98xf32, #tpu.memory_space<smem>>
    %324 = vector.extract_strided_slice %292 {offsets = [0, 6], sizes = [16, 16], strides = [1, 1]} : vector<16x22xf32> to vector<16x16xf32>
    %325 = vector.broadcast %323 : f32 to vector<16x16xf32>
    %326 = arith.mulf %325, %324 : vector<16x16xf32>
    %327 = arith.addf %322, %326 : vector<16x16xf32>
    %c1_50 = arith.constant 1 : index
    %c1_51 = arith.constant 1 : index
    %c0_52 = arith.constant 0 : index
    %328 = vector.load %arg6[%c1_50, %c1_51, %c0_52] : memref<2x22x22xf32, #tpu.memory_space<vmem>>, vector<1x16x22xf32>
    %329 = vector.shape_cast %328 : vector<1x16x22xf32> to vector<16x22xf32>
    %c56 = arith.constant 56 : index
    %330 = memref.load %arg1[%c56] : memref<98xf32, #tpu.memory_space<smem>>
    %331 = vector.extract_strided_slice %329 {offsets = [0, 0], sizes = [16, 16], strides = [1, 1]} : vector<16x22xf32> to vector<16x16xf32>
    %332 = vector.broadcast %330 : f32 to vector<16x16xf32>
    %333 = arith.mulf %332, %331 : vector<16x16xf32>
    %334 = arith.addf %327, %333 : vector<16x16xf32>
    %c57 = arith.constant 57 : index
    %335 = memref.load %arg1[%c57] : memref<98xf32, #tpu.memory_space<smem>>
    %336 = vector.extract_strided_slice %329 {offsets = [0, 1], sizes = [16, 16], strides = [1, 1]} : vector<16x22xf32> to vector<16x16xf32>
    %337 = vector.broadcast %335 : f32 to vector<16x16xf32>
    %338 = arith.mulf %337, %336 : vector<16x16xf32>
    %339 = arith.addf %334, %338 : vector<16x16xf32>
    %c58 = arith.constant 58 : index
    %340 = memref.load %arg1[%c58] : memref<98xf32, #tpu.memory_space<smem>>
    %341 = vector.extract_strided_slice %329 {offsets = [0, 2], sizes = [16, 16], strides = [1, 1]} : vector<16x22xf32> to vector<16x16xf32>
    %342 = vector.broadcast %340 : f32 to vector<16x16xf32>
    %343 = arith.mulf %342, %341 : vector<16x16xf32>
    %344 = arith.addf %339, %343 : vector<16x16xf32>
    %c59 = arith.constant 59 : index
    %345 = memref.load %arg1[%c59] : memref<98xf32, #tpu.memory_space<smem>>
    %346 = vector.extract_strided_slice %329 {offsets = [0, 3], sizes = [16, 16], strides = [1, 1]} : vector<16x22xf32> to vector<16x16xf32>
    %347 = vector.broadcast %345 : f32 to vector<16x16xf32>
    %348 = arith.mulf %347, %346 : vector<16x16xf32>
    %349 = arith.addf %344, %348 : vector<16x16xf32>
    %c60 = arith.constant 60 : index
    %350 = memref.load %arg1[%c60] : memref<98xf32, #tpu.memory_space<smem>>
    %351 = vector.extract_strided_slice %329 {offsets = [0, 4], sizes = [16, 16], strides = [1, 1]} : vector<16x22xf32> to vector<16x16xf32>
    %352 = vector.broadcast %350 : f32 to vector<16x16xf32>
    %353 = arith.mulf %352, %351 : vector<16x16xf32>
    %354 = arith.addf %349, %353 : vector<16x16xf32>
    %c61 = arith.constant 61 : index
    %355 = memref.load %arg1[%c61] : memref<98xf32, #tpu.memory_space<smem>>
    %356 = vector.extract_strided_slice %329 {offsets = [0, 5], sizes = [16, 16], strides = [1, 1]} : vector<16x22xf32> to vector<16x16xf32>
    %357 = vector.broadcast %355 : f32 to vector<16x16xf32>
    %358 = arith.mulf %357, %356 : vector<16x16xf32>
    %359 = arith.addf %354, %358 : vector<16x16xf32>
    %c62 = arith.constant 62 : index
    %360 = memref.load %arg1[%c62] : memref<98xf32, #tpu.memory_space<smem>>
    %361 = vector.extract_strided_slice %329 {offsets = [0, 6], sizes = [16, 16], strides = [1, 1]} : vector<16x22xf32> to vector<16x16xf32>
    %362 = vector.broadcast %360 : f32 to vector<16x16xf32>
    %363 = arith.mulf %362, %361 : vector<16x16xf32>
    %364 = arith.addf %359, %363 : vector<16x16xf32>
    %c1_53 = arith.constant 1 : index
    %c2_54 = arith.constant 2 : index
    %c0_55 = arith.constant 0 : index
    %365 = vector.load %arg6[%c1_53, %c2_54, %c0_55] : memref<2x22x22xf32, #tpu.memory_space<vmem>>, vector<1x16x22xf32>
    %366 = vector.shape_cast %365 : vector<1x16x22xf32> to vector<16x22xf32>
    %c63 = arith.constant 63 : index
    %367 = memref.load %arg1[%c63] : memref<98xf32, #tpu.memory_space<smem>>
    %368 = vector.extract_strided_slice %366 {offsets = [0, 0], sizes = [16, 16], strides = [1, 1]} : vector<16x22xf32> to vector<16x16xf32>
    %369 = vector.broadcast %367 : f32 to vector<16x16xf32>
    %370 = arith.mulf %369, %368 : vector<16x16xf32>
    %371 = arith.addf %364, %370 : vector<16x16xf32>
    %c64 = arith.constant 64 : index
    %372 = memref.load %arg1[%c64] : memref<98xf32, #tpu.memory_space<smem>>
    %373 = vector.extract_strided_slice %366 {offsets = [0, 1], sizes = [16, 16], strides = [1, 1]} : vector<16x22xf32> to vector<16x16xf32>
    %374 = vector.broadcast %372 : f32 to vector<16x16xf32>
    %375 = arith.mulf %374, %373 : vector<16x16xf32>
    %376 = arith.addf %371, %375 : vector<16x16xf32>
    %c65 = arith.constant 65 : index
    %377 = memref.load %arg1[%c65] : memref<98xf32, #tpu.memory_space<smem>>
    %378 = vector.extract_strided_slice %366 {offsets = [0, 2], sizes = [16, 16], strides = [1, 1]} : vector<16x22xf32> to vector<16x16xf32>
    %379 = vector.broadcast %377 : f32 to vector<16x16xf32>
    %380 = arith.mulf %379, %378 : vector<16x16xf32>
    %381 = arith.addf %376, %380 : vector<16x16xf32>
    %c66 = arith.constant 66 : index
    %382 = memref.load %arg1[%c66] : memref<98xf32, #tpu.memory_space<smem>>
    %383 = vector.extract_strided_slice %366 {offsets = [0, 3], sizes = [16, 16], strides = [1, 1]} : vector<16x22xf32> to vector<16x16xf32>
    %384 = vector.broadcast %382 : f32 to vector<16x16xf32>
    %385 = arith.mulf %384, %383 : vector<16x16xf32>
    %386 = arith.addf %381, %385 : vector<16x16xf32>
    %c67 = arith.constant 67 : index
    %387 = memref.load %arg1[%c67] : memref<98xf32, #tpu.memory_space<smem>>
    %388 = vector.extract_strided_slice %366 {offsets = [0, 4], sizes = [16, 16], strides = [1, 1]} : vector<16x22xf32> to vector<16x16xf32>
    %389 = vector.broadcast %387 : f32 to vector<16x16xf32>
    %390 = arith.mulf %389, %388 : vector<16x16xf32>
    %391 = arith.addf %386, %390 : vector<16x16xf32>
    %c68 = arith.constant 68 : index
    %392 = memref.load %arg1[%c68] : memref<98xf32, #tpu.memory_space<smem>>
    %393 = vector.extract_strided_slice %366 {offsets = [0, 5], sizes = [16, 16], strides = [1, 1]} : vector<16x22xf32> to vector<16x16xf32>
    %394 = vector.broadcast %392 : f32 to vector<16x16xf32>
    %395 = arith.mulf %394, %393 : vector<16x16xf32>
    %396 = arith.addf %391, %395 : vector<16x16xf32>
    %c69 = arith.constant 69 : index
    %397 = memref.load %arg1[%c69] : memref<98xf32, #tpu.memory_space<smem>>
    %398 = vector.extract_strided_slice %366 {offsets = [0, 6], sizes = [16, 16], strides = [1, 1]} : vector<16x22xf32> to vector<16x16xf32>
    %399 = vector.broadcast %397 : f32 to vector<16x16xf32>
    %400 = arith.mulf %399, %398 : vector<16x16xf32>
    %401 = arith.addf %396, %400 : vector<16x16xf32>
    %c1_56 = arith.constant 1 : index
    %c3_57 = arith.constant 3 : index
    %c0_58 = arith.constant 0 : index
    %402 = vector.load %arg6[%c1_56, %c3_57, %c0_58] : memref<2x22x22xf32, #tpu.memory_space<vmem>>, vector<1x16x22xf32>
    %403 = vector.shape_cast %402 : vector<1x16x22xf32> to vector<16x22xf32>
    %c70 = arith.constant 70 : index
    %404 = memref.load %arg1[%c70] : memref<98xf32, #tpu.memory_space<smem>>
    %405 = vector.extract_strided_slice %403 {offsets = [0, 0], sizes = [16, 16], strides = [1, 1]} : vector<16x22xf32> to vector<16x16xf32>
    %406 = vector.broadcast %404 : f32 to vector<16x16xf32>
    %407 = arith.mulf %406, %405 : vector<16x16xf32>
    %408 = arith.addf %401, %407 : vector<16x16xf32>
    %c71 = arith.constant 71 : index
    %409 = memref.load %arg1[%c71] : memref<98xf32, #tpu.memory_space<smem>>
    %410 = vector.extract_strided_slice %403 {offsets = [0, 1], sizes = [16, 16], strides = [1, 1]} : vector<16x22xf32> to vector<16x16xf32>
    %411 = vector.broadcast %409 : f32 to vector<16x16xf32>
    %412 = arith.mulf %411, %410 : vector<16x16xf32>
    %413 = arith.addf %408, %412 : vector<16x16xf32>
    %c72 = arith.constant 72 : index
    %414 = memref.load %arg1[%c72] : memref<98xf32, #tpu.memory_space<smem>>
    %415 = vector.extract_strided_slice %403 {offsets = [0, 2], sizes = [16, 16], strides = [1, 1]} : vector<16x22xf32> to vector<16x16xf32>
    %416 = vector.broadcast %414 : f32 to vector<16x16xf32>
    %417 = arith.mulf %416, %415 : vector<16x16xf32>
    %418 = arith.addf %413, %417 : vector<16x16xf32>
    %c73 = arith.constant 73 : index
    %419 = memref.load %arg1[%c73] : memref<98xf32, #tpu.memory_space<smem>>
    %420 = vector.extract_strided_slice %403 {offsets = [0, 3], sizes = [16, 16], strides = [1, 1]} : vector<16x22xf32> to vector<16x16xf32>
    %421 = vector.broadcast %419 : f32 to vector<16x16xf32>
    %422 = arith.mulf %421, %420 : vector<16x16xf32>
    %423 = arith.addf %418, %422 : vector<16x16xf32>
    %c74 = arith.constant 74 : index
    %424 = memref.load %arg1[%c74] : memref<98xf32, #tpu.memory_space<smem>>
    %425 = vector.extract_strided_slice %403 {offsets = [0, 4], sizes = [16, 16], strides = [1, 1]} : vector<16x22xf32> to vector<16x16xf32>
    %426 = vector.broadcast %424 : f32 to vector<16x16xf32>
    %427 = arith.mulf %426, %425 : vector<16x16xf32>
    %428 = arith.addf %423, %427 : vector<16x16xf32>
    %c75 = arith.constant 75 : index
    %429 = memref.load %arg1[%c75] : memref<98xf32, #tpu.memory_space<smem>>
    %430 = vector.extract_strided_slice %403 {offsets = [0, 5], sizes = [16, 16], strides = [1, 1]} : vector<16x22xf32> to vector<16x16xf32>
    %431 = vector.broadcast %429 : f32 to vector<16x16xf32>
    %432 = arith.mulf %431, %430 : vector<16x16xf32>
    %433 = arith.addf %428, %432 : vector<16x16xf32>
    %c76 = arith.constant 76 : index
    %434 = memref.load %arg1[%c76] : memref<98xf32, #tpu.memory_space<smem>>
    %435 = vector.extract_strided_slice %403 {offsets = [0, 6], sizes = [16, 16], strides = [1, 1]} : vector<16x22xf32> to vector<16x16xf32>
    %436 = vector.broadcast %434 : f32 to vector<16x16xf32>
    %437 = arith.mulf %436, %435 : vector<16x16xf32>
    %438 = arith.addf %433, %437 : vector<16x16xf32>
    %c1_59 = arith.constant 1 : index
    %c4_60 = arith.constant 4 : index
    %c0_61 = arith.constant 0 : index
    %439 = vector.load %arg6[%c1_59, %c4_60, %c0_61] : memref<2x22x22xf32, #tpu.memory_space<vmem>>, vector<1x16x22xf32>
    %440 = vector.shape_cast %439 : vector<1x16x22xf32> to vector<16x22xf32>
    %c77 = arith.constant 77 : index
    %441 = memref.load %arg1[%c77] : memref<98xf32, #tpu.memory_space<smem>>
    %442 = vector.extract_strided_slice %440 {offsets = [0, 0], sizes = [16, 16], strides = [1, 1]} : vector<16x22xf32> to vector<16x16xf32>
    %443 = vector.broadcast %441 : f32 to vector<16x16xf32>
    %444 = arith.mulf %443, %442 : vector<16x16xf32>
    %445 = arith.addf %438, %444 : vector<16x16xf32>
    %c78 = arith.constant 78 : index
    %446 = memref.load %arg1[%c78] : memref<98xf32, #tpu.memory_space<smem>>
    %447 = vector.extract_strided_slice %440 {offsets = [0, 1], sizes = [16, 16], strides = [1, 1]} : vector<16x22xf32> to vector<16x16xf32>
    %448 = vector.broadcast %446 : f32 to vector<16x16xf32>
    %449 = arith.mulf %448, %447 : vector<16x16xf32>
    %450 = arith.addf %445, %449 : vector<16x16xf32>
    %c79 = arith.constant 79 : index
    %451 = memref.load %arg1[%c79] : memref<98xf32, #tpu.memory_space<smem>>
    %452 = vector.extract_strided_slice %440 {offsets = [0, 2], sizes = [16, 16], strides = [1, 1]} : vector<16x22xf32> to vector<16x16xf32>
    %453 = vector.broadcast %451 : f32 to vector<16x16xf32>
    %454 = arith.mulf %453, %452 : vector<16x16xf32>
    %455 = arith.addf %450, %454 : vector<16x16xf32>
    %c80 = arith.constant 80 : index
    %456 = memref.load %arg1[%c80] : memref<98xf32, #tpu.memory_space<smem>>
    %457 = vector.extract_strided_slice %440 {offsets = [0, 3], sizes = [16, 16], strides = [1, 1]} : vector<16x22xf32> to vector<16x16xf32>
    %458 = vector.broadcast %456 : f32 to vector<16x16xf32>
    %459 = arith.mulf %458, %457 : vector<16x16xf32>
    %460 = arith.addf %455, %459 : vector<16x16xf32>
    %c81 = arith.constant 81 : index
    %461 = memref.load %arg1[%c81] : memref<98xf32, #tpu.memory_space<smem>>
    %462 = vector.extract_strided_slice %440 {offsets = [0, 4], sizes = [16, 16], strides = [1, 1]} : vector<16x22xf32> to vector<16x16xf32>
    %463 = vector.broadcast %461 : f32 to vector<16x16xf32>
    %464 = arith.mulf %463, %462 : vector<16x16xf32>
    %465 = arith.addf %460, %464 : vector<16x16xf32>
    %c82 = arith.constant 82 : index
    %466 = memref.load %arg1[%c82] : memref<98xf32, #tpu.memory_space<smem>>
    %467 = vector.extract_strided_slice %440 {offsets = [0, 5], sizes = [16, 16], strides = [1, 1]} : vector<16x22xf32> to vector<16x16xf32>
    %468 = vector.broadcast %466 : f32 to vector<16x16xf32>
    %469 = arith.mulf %468, %467 : vector<16x16xf32>
    %470 = arith.addf %465, %469 : vector<16x16xf32>
    %c83 = arith.constant 83 : index
    %471 = memref.load %arg1[%c83] : memref<98xf32, #tpu.memory_space<smem>>
    %472 = vector.extract_strided_slice %440 {offsets = [0, 6], sizes = [16, 16], strides = [1, 1]} : vector<16x22xf32> to vector<16x16xf32>
    %473 = vector.broadcast %471 : f32 to vector<16x16xf32>
    %474 = arith.mulf %473, %472 : vector<16x16xf32>
    %475 = arith.addf %470, %474 : vector<16x16xf32>
    %c1_62 = arith.constant 1 : index
    %c5_63 = arith.constant 5 : index
    %c0_64 = arith.constant 0 : index
    %476 = vector.load %arg6[%c1_62, %c5_63, %c0_64] : memref<2x22x22xf32, #tpu.memory_space<vmem>>, vector<1x16x22xf32>
    %477 = vector.shape_cast %476 : vector<1x16x22xf32> to vector<16x22xf32>
    %c84 = arith.constant 84 : index
    %478 = memref.load %arg1[%c84] : memref<98xf32, #tpu.memory_space<smem>>
    %479 = vector.extract_strided_slice %477 {offsets = [0, 0], sizes = [16, 16], strides = [1, 1]} : vector<16x22xf32> to vector<16x16xf32>
    %480 = vector.broadcast %478 : f32 to vector<16x16xf32>
    %481 = arith.mulf %480, %479 : vector<16x16xf32>
    %482 = arith.addf %475, %481 : vector<16x16xf32>
    %c85 = arith.constant 85 : index
    %483 = memref.load %arg1[%c85] : memref<98xf32, #tpu.memory_space<smem>>
    %484 = vector.extract_strided_slice %477 {offsets = [0, 1], sizes = [16, 16], strides = [1, 1]} : vector<16x22xf32> to vector<16x16xf32>
    %485 = vector.broadcast %483 : f32 to vector<16x16xf32>
    %486 = arith.mulf %485, %484 : vector<16x16xf32>
    %487 = arith.addf %482, %486 : vector<16x16xf32>
    %c86 = arith.constant 86 : index
    %488 = memref.load %arg1[%c86] : memref<98xf32, #tpu.memory_space<smem>>
    %489 = vector.extract_strided_slice %477 {offsets = [0, 2], sizes = [16, 16], strides = [1, 1]} : vector<16x22xf32> to vector<16x16xf32>
    %490 = vector.broadcast %488 : f32 to vector<16x16xf32>
    %491 = arith.mulf %490, %489 : vector<16x16xf32>
    %492 = arith.addf %487, %491 : vector<16x16xf32>
    %c87 = arith.constant 87 : index
    %493 = memref.load %arg1[%c87] : memref<98xf32, #tpu.memory_space<smem>>
    %494 = vector.extract_strided_slice %477 {offsets = [0, 3], sizes = [16, 16], strides = [1, 1]} : vector<16x22xf32> to vector<16x16xf32>
    %495 = vector.broadcast %493 : f32 to vector<16x16xf32>
    %496 = arith.mulf %495, %494 : vector<16x16xf32>
    %497 = arith.addf %492, %496 : vector<16x16xf32>
    %c88 = arith.constant 88 : index
    %498 = memref.load %arg1[%c88] : memref<98xf32, #tpu.memory_space<smem>>
    %499 = vector.extract_strided_slice %477 {offsets = [0, 4], sizes = [16, 16], strides = [1, 1]} : vector<16x22xf32> to vector<16x16xf32>
    %500 = vector.broadcast %498 : f32 to vector<16x16xf32>
    %501 = arith.mulf %500, %499 : vector<16x16xf32>
    %502 = arith.addf %497, %501 : vector<16x16xf32>
    %c89 = arith.constant 89 : index
    %503 = memref.load %arg1[%c89] : memref<98xf32, #tpu.memory_space<smem>>
    %504 = vector.extract_strided_slice %477 {offsets = [0, 5], sizes = [16, 16], strides = [1, 1]} : vector<16x22xf32> to vector<16x16xf32>
    %505 = vector.broadcast %503 : f32 to vector<16x16xf32>
    %506 = arith.mulf %505, %504 : vector<16x16xf32>
    %507 = arith.addf %502, %506 : vector<16x16xf32>
    %c90 = arith.constant 90 : index
    %508 = memref.load %arg1[%c90] : memref<98xf32, #tpu.memory_space<smem>>
    %509 = vector.extract_strided_slice %477 {offsets = [0, 6], sizes = [16, 16], strides = [1, 1]} : vector<16x22xf32> to vector<16x16xf32>
    %510 = vector.broadcast %508 : f32 to vector<16x16xf32>
    %511 = arith.mulf %510, %509 : vector<16x16xf32>
    %512 = arith.addf %507, %511 : vector<16x16xf32>
    %c1_65 = arith.constant 1 : index
    %c6_66 = arith.constant 6 : index
    %c0_67 = arith.constant 0 : index
    %513 = vector.load %arg6[%c1_65, %c6_66, %c0_67] : memref<2x22x22xf32, #tpu.memory_space<vmem>>, vector<1x16x22xf32>
    %514 = vector.shape_cast %513 : vector<1x16x22xf32> to vector<16x22xf32>
    %c91 = arith.constant 91 : index
    %515 = memref.load %arg1[%c91] : memref<98xf32, #tpu.memory_space<smem>>
    %516 = vector.extract_strided_slice %514 {offsets = [0, 0], sizes = [16, 16], strides = [1, 1]} : vector<16x22xf32> to vector<16x16xf32>
    %517 = vector.broadcast %515 : f32 to vector<16x16xf32>
    %518 = arith.mulf %517, %516 : vector<16x16xf32>
    %519 = arith.addf %512, %518 : vector<16x16xf32>
    %c92 = arith.constant 92 : index
    %520 = memref.load %arg1[%c92] : memref<98xf32, #tpu.memory_space<smem>>
    %521 = vector.extract_strided_slice %514 {offsets = [0, 1], sizes = [16, 16], strides = [1, 1]} : vector<16x22xf32> to vector<16x16xf32>
    %522 = vector.broadcast %520 : f32 to vector<16x16xf32>
    %523 = arith.mulf %522, %521 : vector<16x16xf32>
    %524 = arith.addf %519, %523 : vector<16x16xf32>
    %c93 = arith.constant 93 : index
    %525 = memref.load %arg1[%c93] : memref<98xf32, #tpu.memory_space<smem>>
    %526 = vector.extract_strided_slice %514 {offsets = [0, 2], sizes = [16, 16], strides = [1, 1]} : vector<16x22xf32> to vector<16x16xf32>
    %527 = vector.broadcast %525 : f32 to vector<16x16xf32>
    %528 = arith.mulf %527, %526 : vector<16x16xf32>
    %529 = arith.addf %524, %528 : vector<16x16xf32>
    %c94 = arith.constant 94 : index
    %530 = memref.load %arg1[%c94] : memref<98xf32, #tpu.memory_space<smem>>
    %531 = vector.extract_strided_slice %514 {offsets = [0, 3], sizes = [16, 16], strides = [1, 1]} : vector<16x22xf32> to vector<16x16xf32>
    %532 = vector.broadcast %530 : f32 to vector<16x16xf32>
    %533 = arith.mulf %532, %531 : vector<16x16xf32>
    %534 = arith.addf %529, %533 : vector<16x16xf32>
    %c95 = arith.constant 95 : index
    %535 = memref.load %arg1[%c95] : memref<98xf32, #tpu.memory_space<smem>>
    %536 = vector.extract_strided_slice %514 {offsets = [0, 4], sizes = [16, 16], strides = [1, 1]} : vector<16x22xf32> to vector<16x16xf32>
    %537 = vector.broadcast %535 : f32 to vector<16x16xf32>
    %538 = arith.mulf %537, %536 : vector<16x16xf32>
    %539 = arith.addf %534, %538 : vector<16x16xf32>
    %c96 = arith.constant 96 : index
    %540 = memref.load %arg1[%c96] : memref<98xf32, #tpu.memory_space<smem>>
    %541 = vector.extract_strided_slice %514 {offsets = [0, 5], sizes = [16, 16], strides = [1, 1]} : vector<16x22xf32> to vector<16x16xf32>
    %542 = vector.broadcast %540 : f32 to vector<16x16xf32>
    %543 = arith.mulf %542, %541 : vector<16x16xf32>
    %544 = arith.addf %539, %543 : vector<16x16xf32>
    %c97 = arith.constant 97 : index
    %545 = memref.load %arg1[%c97] : memref<98xf32, #tpu.memory_space<smem>>
    %546 = vector.extract_strided_slice %514 {offsets = [0, 6], sizes = [16, 16], strides = [1, 1]} : vector<16x22xf32> to vector<16x16xf32>
    %547 = vector.broadcast %545 : f32 to vector<16x16xf32>
    %548 = arith.mulf %547, %546 : vector<16x16xf32>
    %549 = arith.addf %544, %548 : vector<16x16xf32>
    %550 = arith.negf %549 : vector<16x16xf32>
    %551 = math.exp %550 : vector<16x16xf32>
    %cst_68 = arith.constant 1.000000e+00 : f32
    %552 = vector.broadcast %cst_68 : f32 to vector<16x16xf32>
    %553 = arith.addf %552, %551 : vector<16x16xf32>
    %554 = arith.divf %552, %553 : vector<16x16xf32>
    %555 = vector.shape_cast %554 : vector<16x16xf32> to vector<1x16x16xf32>
    %556 = vector.broadcast %555 : vector<1x16x16xf32> to vector<4x16x16xf32>
    %557 = arith.mulf %18, %556 : vector<4x16x16xf32>
    %c0_69 = arith.constant 0 : index
    %c0_70 = arith.constant 0 : index
    %c0_71 = arith.constant 0 : index
    %c0_72 = arith.constant 0 : index
    %558 = vector.load %arg5[%c0_69, %c0_70, %c0_71, %c0_72] : memref<1x4x16x16xf32, #tpu.memory_space<vmem>>, vector<1x4x16x16xf32>
    %559 = vector.shape_cast %558 : vector<1x4x16x16xf32> to vector<4x16x16xf32>
    %560 = vector.shape_cast %557 : vector<4x16x16xf32> to vector<1x4x16x16xf32>
    tpu.vector_store %arg5[%c0_69, %c0_70, %c0_71, %c0_72], %560 {strides = array<i32>} : memref<1x4x16x16xf32, #tpu.memory_space<vmem>>, vector<1x4x16x16xf32>,
    return
  }
  func.func @transform_0(%arg0: i32, %arg1: memref<98xf32, #tpu.memory_space<smem>>) -> (i32, i32, i32, i32) {
    %c0_i32 = arith.constant 0 : i32
    %c0_i32_0 = arith.constant 0 : i32
    %c0_i32_1 = arith.constant 0 : i32
    %c0_i32_2 = arith.constant 0 : i32
    return %arg0, %c0_i32, %c0_i32_0, %c0_i32_1 : i32, i32, i32, i32
  }
  func.func @transform_1(%arg0: i32, %arg1: memref<98xf32, #tpu.memory_space<smem>>) -> (i32, i32) {
    %c0_i32 = arith.constant 0 : i32
    %c0_i32_0 = arith.constant 0 : i32
    %c0_i32_1 = arith.constant 0 : i32
    return %c0_i32, %c0_i32_0 : i32, i32
  }
  func.func @transform_2(%arg0: i32, %arg1: memref<98xf32, #tpu.memory_space<smem>>) -> (i32, i32) {
    %c0_i32 = arith.constant 0 : i32
    %c0_i32_0 = arith.constant 0 : i32
    %c0_i32_1 = arith.constant 0 : i32
    return %c0_i32, %c0_i32_0 : i32, i32
  }
  func.func @transform_3(%arg0: i32, %arg1: memref<98xf32, #tpu.memory_space<smem>>) -> (i32, i32, i32, i32) {
    %c0_i32 = arith.constant 0 : i32
    %c0_i32_0 = arith.constant 0 : i32
    %c0_i32_1 = arith.constant 0 : i32
    %c0_i32_2 = arith.constant 0 : i32
    return %arg0, %c0_i32, %c0_i32_0, %c0_i32_1 : i32, i32, i32, i32
  }
}

</mosaic_0001>

<llo_original>
// kernel: tpu_custom_call.1
$region0: #{tpu_custom_call.1}
  #allocation0 [shape = 'u32[]', space=smem, size = 0x4, offset = 0x4, fixed_abs, tag = 'smem constant byte address 0x4 - core index']
  #allocation1 [shape = 'u32[72,128]{1,0:T(1,128)}', space=vmem, size = 0x9000, scoped, tag = 'internal scratch']
  #allocation2 [shape = 'f32[2,22,22]{2,1,0:T(8,128)}', space=vmem, size = 0x6000, scoped, tag = 'scratch operand']
  #allocation3 [shape = 's32[1]{0}', space=sflag, size = 0x4, scoped, tag = 'scoped memory for tpu_custom_call.1']
  #allocation4 [shape = 'u8[512]{0}', space=smem, size = 0x200, scoped, tag = 'prefetched SMEM operand 0']
  %s0 = inlined_call_operand.vmem [shape: f32[98], index: 0, kind: input, shape index: {}]
  %s1 = inlined_call_operand.hbm [shape: f32[2,4,16,16], index: 1, kind: input, shape index: {}]
  %s2 = inlined_call_operand.vmem [shape: f32[4,4], index: 2, kind: input, shape index: {}]
  %s3 = inlined_call_operand.vmem [shape: f32[4,1], index: 3, kind: input, shape index: {}]
  %s4 = inlined_call_operand.hbm [shape: f32[2,4,16,16], index: 4, kind: output, shape index: {}]
  %s5 = sld [smem:[#allocation0]]
  $region49: #{tpu_custom_call.1} parent=0
    _
  %s7 = ssub.s32 1, %s5
  %s8 = scalar_select 0, %s7, %s5
  %s10 = sshll.u32 %s0, 4
  %s11 = int_to_ptr.vmem [resolvable:$true] %s10
  %13 = dma.vmem_to_smem %s11, 16, [#allocation4], [#allocation3]
  %15 = dma.done [#allocation3], 16
  %16 = sfence
  $region1: #{tpu_custom_call.1} parent=0
    #allocation5 [shape = 'u8[65536]{0}', space=vmem, size = 0x10000, scoped, tag = 'input window, operand 1']
    #allocation6 [shape = 's32[2]{0}', space=sflag, size = 0x8, scoped, tag = 'scoped memory for tpu_custom_call.1']
    #allocation7 [shape = 's32[2]{0}', space=sflag, size = 0x8, scoped, tag = 'scoped memory for tpu_custom_call.1']
    #allocation8 [shape = 'u8[65536]{0}', space=vmem, size = 0x10000, scoped, tag = 'output window, operand 0']
    %17 = vsyncpa [#allocation6], 0
    %s18 = scalar_lea.sflag [#allocation6], 1
    %19 = vsyncpa %s18, 0
    %20 = vsyncpa [#allocation7], 0
    %s21 = scalar_lea.sflag [#allocation7], 1
    %22 = vsyncpa %s21, 0
    loop: start=0, step=1, limit=4
    $region2: #{tpu_custom_call.1} parent=1 // loop_pre_header
      _
    $region3: #{tpu_custom_call.1} parent=1 // loop_header
      %s24 = sphi 0, %s28
      %p25 = scmp.ge.s32.totalorder %s24, 4
      %s34 = sphi 0, %s36
      %s37 = sphi 0, %s34
      %s38 = sphi 0, %s37
      %s54 = sphi 0, %s38
      %s58 = sphi 0, %s58
      %s60 = sphi 0, %s58
      %s61 = sphi 0, %s60
      %s75 = sphi 0, %s61
      %s79 = sphi 0, %s79
      %s81 = sphi 0, %s79
      %s82 = sphi 0, %s81
      %s96 = sphi 0, %s82
      %s102 = sphi 0, %s104
      %s105 = sphi 0, %s102
      %s106 = sphi 0, %s105
      %s122 = sphi 0, %s106
    $region4: #{tpu_custom_call.1} parent=1 // loop_header_branch
      %27 = sbr.rel (%p25) target = $region8
    $region5: #{tpu_custom_call.1} parent=1 // loop_body
      %s29 = ssub.s32 %s24, 1
      %s30 = ssub.s32 %s24, 2
      %s31 = sadd.s32 %s24, 1
      %s32 = ssub.s32 %s24, %s31
      %p33 = scmp.eq.s32.totalorder %s32, 0
      %s35 = sadd.s32 %s34, 1
      %s36 = scalar_select %p33, %s34, %s35
      %p39 = pneg %p33
      %p40 = scmp.eq.s32.totalorder %s24, 1
      %p41 = por %p39, %p40
      %p42 = scmp.ne.s32.totalorder %s34, %s37
      %p43 = scmp.eq.s32.totalorder %s24, 0
      %p44 = por %p42, %p43
      %p45 = scmp.ne.s32.totalorder %s34, %s37
      %p46 = scmp.eq.s32.totalorder %s29, 1
      %p47 = por %p45, %p46
      %p48 = scmp.ne.s32.totalorder %s37, %s38
      %p49 = scmp.eq.s32.totalorder %s29, 0
      %p50 = por %p48, %p49
      %p51 = scmp.ne.s32.totalorder %s37, %s38
      %p52 = scmp.eq.s32.totalorder %s30, 1
      %p53 = por %p51, %p52
      %p55 = scmp.ne.s32.totalorder %s38, %s54
      %p56 = scmp.eq.s32.totalorder %s30, 0
      %p57 = por %p55, %p56
      %s59 = sadd.s32 %s58, 1
      %p62 = scmp.eq.s32.totalorder %s24, 1
      %p63 = scmp.ne.s32.totalorder %s58, %s60
      %p64 = scmp.eq.s32.totalorder %s24, 0
      %p65 = por %p63, %p64
      %p66 = scmp.ne.s32.totalorder %s58, %s60
      %p67 = scmp.eq.s32.totalorder %s29, 1
      %p68 = por %p66, %p67
      %p69 = scmp.ne.s32.totalorder %s60, %s61
      %p70 = scmp.eq.s32.totalorder %s29, 0
      %p71 = por %p69, %p70
      %p72 = scmp.ne.s32.totalorder %s60, %s61
      %p73 = scmp.eq.s32.totalorder %s30, 1
      %p74 = por %p72, %p73
      %p76 = scmp.ne.s32.totalorder %s61, %s75
      %p77 = scmp.eq.s32.totalorder %s30, 0
      %p78 = por %p76, %p77
      %s80 = sadd.s32 %s79, 1
      %p83 = scmp.eq.s32.totalorder %s24, 1
      %p84 = scmp.ne.s32.totalorder %s79, %s81
      %p85 = scmp.eq.s32.totalorder %s24, 0
      %p86 = por %p84, %p85
      %p87 = scmp.ne.s32.totalorder %s79, %s81
      %p88 = scmp.eq.s32.totalorder %s29, 1
      %p89 = por %p87, %p88
      %p90 = scmp.ne.s32.totalorder %s81, %s82
      %p91 = scmp.eq.s32.totalorder %s29, 0
      %p92 = por %p90, %p91
      %p93 = scmp.ne.s32.totalorder %s81, %s82
      %p94 = scmp.eq.s32.totalorder %s30, 1
      %p95 = por %p93, %p94
      %p97 = scmp.ne.s32.totalorder %s82, %s96
      %p98 = scmp.eq.s32.totalorder %s30, 0
      %p99 = por %p97, %p98
      %s100 = ssub.s32 %s24, %s31
      %p101 = scmp.eq.s32.totalorder %s100, 0
      %s103 = sadd.s32 %s102, 1
      %s104 = scalar_select %p101, %s102, %s103
      %p107 = pneg %p101
      %p108 = scmp.eq.s32.totalorder %s24, 1
      %p109 = por %p107, %p108
      %p110 = scmp.ne.s32.totalorder %s102, %s105
      %p111 = scmp.eq.s32.totalorder %s24, 0
      %p112 = por %p110, %p111
      %p113 = scmp.ne.s32.totalorder %s102, %s105
      %p114 = scmp.eq.s32.totalorder %s29, 1
      %p115 = por %p113, %p114
      %p116 = scmp.ne.s32.totalorder %s105, %s106
      %p117 = scmp.eq.s32.totalorder %s29, 0
      %p118 = por %p116, %p117
      %p119 = scmp.ne.s32.totalorder %s105, %s106
      %p120 = scmp.eq.s32.totalorder %s30, 1
      %p121 = por %p119, %p120
      %p123 = scmp.ne.s32.totalorder %s106, %s122
      %p124 = scmp.eq.s32.totalorder %s30, 0
      %p125 = por %p123, %p124
      %p126 = scmp.le.s32.totalorder 1, %s24
      %p127 = scmp.lt.s32.totalorder %s24, 3
      %p128 = pnand %p126, %p127
      %p129 = pneg %p128
      // Predicated region
      $region9: #{tpu_custom_call.1} parent=5 // pred_check
        _
      $region10: #{tpu_custom_call.1} parent=5 // pred_check_branch
        %131 = sbr.rel (%p128) target = $region12
      $region11: #{tpu_custom_call.1} parent=5 // pred_region
        %s132 = ssub.s32 %s24, 1
        // Predicated region
        $region13: #{tpu_custom_call.1} parent=11 // pred_check
          %p133 = pneg %p71
        $region14: #{tpu_custom_call.1} parent=11 // pred_check_branch
          %135 = sbr.rel (%p133) target = $region16
        $region15: #{tpu_custom_call.1} parent=11 // pred_region
          _
        $region16: #{tpu_custom_call.1} parent=11 // pred_fallthru
          _
        // Predicated region
        $region17: #{tpu_custom_call.1} parent=11 // pred_check
          %p136 = pneg %p92
        $region18: #{tpu_custom_call.1} parent=11 // pred_check_branch
          %138 = sbr.rel (%p136) target = $region20
        $region19: #{tpu_custom_call.1} parent=11 // pred_region
          _
        $region20: #{tpu_custom_call.1} parent=11 // pred_fallthru
          _
      $region12: #{tpu_custom_call.1} parent=5 // pred_fallthru
        _
      %p139 = scmp.lt.s32.totalorder %s24, 2
      // Predicated region
      $region21: #{tpu_custom_call.1} parent=5 // pred_check
        %p140 = pneg %p139
      $region22: #{tpu_custom_call.1} parent=5 // pred_check_branch
        %142 = sbr.rel (%p140) target = $region24
      $region23: #{tpu_custom_call.1} parent=5 // pred_region
        // Predicated region
        $region25: #{tpu_custom_call.1} parent=23 // pred_check
          %p143 = pneg %p44
        $region26: #{tpu_custom_call.1} parent=23 // pred_check_branch
          %145 = sbr.rel (%p143) target = $region28
        $region27: #{tpu_custom_call.1} parent=23 // pred_region
          %s146 = sand.u32 %s34, 1
          %s147 = scalar_lea.sflag [#allocation6], %s146
          %s148 = sand.u32 %s34, 1
          %s149 = smul.addr %s148, 64
          %s150 = scalar_lea.vmem [#allocation5], %s149
          %152 = vsyncadd %s147, 0
          %s153 = smul.addr %s24, 8
          %s154 = smul.addr %s153, 8
          %s155 = scalar_lea.hbm %s1, %s154
          %s156 = sshll.u32 %s155, 4
          %s157 = int_to_ptr.hbm [resolvable:$true] %s156
          %s158 = sshll.u32 %s150, 4
          %s159 = int_to_ptr.vmem [resolvable:$true] %s158
          %164 = dma.hbm_to_vmem [thread:$0]  %s157, 1024, %s159, %s147, 128, 128, 8
        $region28: #{tpu_custom_call.1} parent=23 // pred_fallthru
          _
      $region24: #{tpu_custom_call.1} parent=5 // pred_fallthru
        _
      %p165 = scmp.le.s32.totalorder 1, %s24
      %p166 = scmp.lt.s32.totalorder %s24, 3
      %p167 = pnand %p165, %p166
      %p168 = pneg %p167
      // Predicated region
      $region29: #{tpu_custom_call.1} parent=5 // pred_check
        _
      $region30: #{tpu_custom_call.1} parent=5 // pred_check_branch
        %170 = sbr.rel (%p167) target = $region32
      $region31: #{tpu_custom_call.1} parent=5 // pred_region
        %s171 = ssub.s32 %s24, 1
        %s172 = sand.u32 %s37, 1
        %s173 = scalar_lea.sflag [#allocation6], %s172
        %s174 = sand.u32 %s37, 1
        %s175 = smul.addr %s174, 64
        %s176 = scalar_lea.vmem [#allocation5], %s175
        // Predicated region
        $region33: #{tpu_custom_call.1} parent=31 // pred_check
          %p177 = pneg %p50
        $region34: #{tpu_custom_call.1} parent=31 // pred_check_branch
          %179 = sbr.rel (%p177) target = $region36
        $region35: #{tpu_custom_call.1} parent=31 // pred_region
          %181 = dma.done %s173, 1024
        $region36: #{tpu_custom_call.1} parent=31 // pred_fallthru
          _
        %s182 = sand.u32 %s37, 1
        %s183 = scalar_lea.sflag [#allocation6], %s182
        %s184 = sand.u32 %s37, 1
        %s185 = smul.addr %s184, 64
        %s186 = scalar_lea.vmem [#allocation5], %s185
        %p187 = pneg %p50
        %p188 = pneg %p47
        %p189 = pneg %p71
        %p190 = pneg %p68
        %p191 = pneg %p92
        %p192 = pneg %p89
        %p193 = pneg %p118
        %p194 = pneg %p115
        %s195 = sand.u32 %s105, 1
        %s196 = scalar_lea.sflag [#allocation7], %s195
        %s197 = sand.u32 %s105, 1
        %s198 = smul.addr %s197, 64
        %s199 = scalar_lea.vmem [#allocation8], %s198
        %v200 = vld [vmem:[%s176] sm:$0xff]
        %v201 = vld [vmem:[%s176 + $0x8] sm:$0xff]
        %v202 = vld [vmem:[%s176 + $0x10] sm:$0xff]
        %v203 = vld [vmem:[%s176 + $0x18] sm:$0xff]
        %v204 = vld [vmem:[%s176 + $0x20] sm:$0xff]
        %v205 = vld [vmem:[%s176 + $0x28] sm:$0xff]
        %v206 = vld [vmem:[%s176 + $0x30] sm:$0xff]
        %v207 = vld [vmem:[%s176 + $0x38] sm:$0xff]
        %vm208 = vcmask 130048
        %v209 = vsel %vm208, %v200, 0.0
        %210 = vadd.xlane.f32.xlu0 %v209
        %v211 = vpop.xlane.xlu0 %210
        %v212 = vsel %vm208, %v201, 0.0
        %213 = vadd.xlane.f32.xlu0 %v212
        %v214 = vpop.xlane.xlu0 %213
        %v215 = vsel %vm208, %v202, 0.0
        %216 = vadd.xlane.f32.xlu0 %v215
        %v217 = vpop.xlane.xlu0 %216
        %v218 = vsel %vm208, %v203, 0.0
        %219 = vadd.xlane.f32.xlu0 %v218
        %v220 = vpop.xlane.xlu0 %219
        %v221 = vsel %vm208, %v204, 0.0
        %222 = vadd.xlane.f32.xlu0 %v221
        %v223 = vpop.xlane.xlu0 %222
        %v224 = vsel %vm208, %v205, 0.0
        %225 = vadd.xlane.f32.xlu0 %v224
        %v226 = vpop.xlane.xlu0 %225
        %v227 = vsel %vm208, %v206, 0.0
        %228 = vadd.xlane.f32.xlu0 %v227
        %v229 = vpop.xlane.xlu0 %228
        %v230 = vsel %vm208, %v207, 0.0
        %231 = vadd.xlane.f32.xlu0 %v230
        %v232 = vpop.xlane.xlu0 %231
        %v241 = vlaneseq
        %v242 = vand.u32 %v241, 127
        %v243 = vperm.slane %v211, %v242
        %v244 = vadd.s32 %v242, 4294967288
        %v245 = vperm.slane %v214, %v244
        %vm246 = vcmask 130112
        %v247 = vsel %vm246, %v245, %v243
        %v248 = vperm.slane %v217, %v242
        %v249 = vperm.slane %v220, %v244
        %v250 = vsel %vm246, %v249, %v248
        %v251 = vperm.slane %v223, %v242
        %v252 = vperm.slane %v226, %v244
        %v253 = vsel %vm246, %v252, %v251
        %v254 = vperm.slane %v229, %v242
        %v255 = vperm.slane %v232, %v244
        %v256 = vsel %vm246, %v255, %v254
        %vm257 = vcmask 1041409
        %v258 = vsel %vm257, %v250, %v247
        %vm259 = vcmask 1042434
        %v260 = vsel %vm259, %v253, %v258
        %vm261 = vcmask 1043459
        %v262 = vsel %vm261, %v256, %v260
        %vm264 = vcmask 125952
        %v265 = vsel %vm264, %v262, 0.0
        %266 = vadd.xlane.f32.xlu0 %v265
        %v267 = vpop.xlane.xlu0 %266
        %v268 = vmul.f32 %v267, 0.00390625
        %v269 = vld [vmem:[%s2] sm:$0xf]
        %v270 = vld [vmem:[%s3] sm:$0xf]
        %vm271 = vcmask 31744
        %v273 = vsel %vm271, %v269, 0
        %vm275 = vcmask 1043456
        %v277 = vsel %vm275, %v268, 0
        %279 = vmatpush.msra.mxu0 0.0
        %280 = vmatpush.msra.mxu0 0.0
        %281 = vmatpush.msra.mxu0 0.0
        %282 = vmatpush.msra.mxu0 0.0
        %283 = vmatpush.msra.mxu0 0.0
        %284 = vmatpush.msra.mxu0 0.0
        %285 = vmatpush.msra.mxu0 0.0
        %286 = vmatpush.msra.mxu0 0.0
        %287 = vmatpush.msra.mxu0 0.0
        %288 = vmatpush.msra.mxu0 0.0
        %289 = vmatpush.msra.mxu0 0.0
        %290 = vmatpush.msra.mxu0 0.0
        %291 = vmatpush.msra.mxu0 0.0
        %292 = vmatpush.msra.mxu0 0.0
        %293 = vmatpush.msra.mxu0 0.0
        %294 = vmatpush.msra.mxu0 %v277
        %295 = vmatmul.f32.gmra.mxu0 %v273
        %v296 = vpop.f32.mrf.mxu0
        %v297 = vadd.f32 %v270, %v296
        %298 = vdwg.mxu0
        %v299 = vxor.u32 %v297, 2147483648
        %v300 = vmul.f32 %v299, 1.442695
        %v301 = vpow.pop %v300
        %v302 = vadd.f32 %v301, 1.0
        %v303 = vrcp.pop %v302
        %v304 = vmul.f32 %v302, %v303
        %v305 = vsub.f32 1.0, %v304
        %v306 = vmul.f32 %v303, %v305
        %v307 = vadd.f32 %v303, %v306
        %vm308 = vweird.f32 %v302
        %vm309 = vweird.f32 %v303
        %vm310 = vmor %vm308, %vm309
        %v311 = vsel %vm310, %v303, %v307
        %v312 = vand.u32 2147483647, %v302
        %vm313 = vcmp.eq.f32.partialorder %v312, 8.507059e+37
        %v314 = vand.u32 %v302, 2147483648
        %v315 = vor.u32 1.1754944e-38, %v314
        %v316 = vsel %vm313, %v315, %v311
        %v317 = vmul.f32 1.0, %v316
        %v319 = vrot.slane %v317, 1
        %v320 = vrot.slane %v317, 2
        %v321 = vrot.slane %v317, 3
        %v322 = vperm.slane %v317, 0
        %v323 = vperm.slane %v319, 0
        %v324 = vperm.slane %v320, 0
        %v325 = vperm.slane %v321, 0
        %326 = vset.pattern.permute.xlu0 0
        %327 = vperm.xlu0 %326, %v322
        %v328 = vpop.permute.xlu0 %327
        %330 = vset.pattern.permute.xlu0 0
        %331 = vperm.xlu0 %330, %v323
        %v332 = vpop.permute.xlu0 %331
        %334 = vset.pattern.permute.xlu0 0
        %335 = vperm.xlu0 %334, %v324
        %v336 = vpop.permute.xlu0 %335
        %338 = vset.pattern.permute.xlu0 0
        %339 = vperm.xlu0 %338, %v325
        %v340 = vpop.permute.xlu0 %339
        %v342 = vmul.f32 %v200, %v328
        %v343 = vmul.f32 %v201, %v328
        %v344 = vmul.f32 %v202, %v332
        %v345 = vmul.f32 %v203, %v332
        %v346 = vmul.f32 %v204, %v336
        %v347 = vmul.f32 %v205, %v336
        %v348 = vmul.f32 %v206, %v340
        %v349 = vmul.f32 %v207, %v340
        %v350 = vsel %vm208, %v342, 0.0
        %v351 = vsel %vm208, %v344, 0.0
        %v352 = vadd.f32 %v350, %v351
        %v353 = vsel %vm208, %v346, 0.0
        %v354 = vadd.f32 %v352, %v353
        %v355 = vsel %vm208, %v348, 0.0
        %v356 = vadd.f32 %v354, %v355
        %v357 = vsel %vm208, %v343, 0.0
        %v358 = vsel %vm208, %v345, 0.0
        %v359 = vadd.f32 %v357, %v358
        %v360 = vsel %vm208, %v347, 0.0
        %v361 = vadd.f32 %v359, %v360
        %v362 = vsel %vm208, %v349, 0.0
        %v363 = vadd.f32 %v361, %v362
        %v364 = vrcp.pop 4.0
        %v365 = vmul.f32 4.0, %v364
        %v366 = vsub.f32 1.0, %v365
        %v367 = vmul.f32 %v364, %v366
        %v368 = vadd.f32 %v364, %v367
        %vm369 = vweird.f32 %v364
        %v370 = vsel %vm369, %v364, %v368
        %v371 = vmul.f32 %v356, %v370
        %v372 = vmul.f32 %v363, %v370
        %v373 = vsel %vm208, %v342, -inf
        %v374 = vsel %vm208, %v344, -inf
        %v375 = vsel %vm208, %v346, -inf
        %v376 = vmax.f32 %v373, %v375
        %v377 = vsel %vm208, %v348, -inf
        %v378 = vmax.f32 %v374, %v377
        %v379 = vmax.f32 %v376, %v378
        %v380 = vsel %vm208, %v343, -inf
        %v381 = vsel %vm208, %v345, -inf
        %v382 = vsel %vm208, %v347, -inf
        %v383 = vmax.f32 %v380, %v382
        %v384 = vsel %vm208, %v349, -inf
        %v385 = vmax.f32 %v381, %v384
        %v386 = vmax.f32 %v383, %v385
        %vm387 = vcmask 179200
        %388 = vst.msk [vmem:[#allocation2] sm:$0xff] %vm387, 0.0
        %389 = vst.msk [vmem:[#allocation2 + $0x8] sm:$0xff] %vm387, 0.0
        %vm390 = vcmask 177152
        %391 = vst.msk [vmem:[#allocation2 + $0x10] sm:$0x3f] %vm390, 0.0
        %392 = vst.msk [vmem:[#allocation2 + $0x18] sm:$0xff] %vm387, 0.0
        %393 = vst.msk [vmem:[#allocation2 + $0x20] sm:$0xff] %vm387, 0.0
        %394 = vst.msk [vmem:[#allocation2 + $0x28] sm:$0x3f] %vm390, 0.0
        %397 = vrot.lane.b32.xlu0 %v371, 3
        %v398 = vpop.permute.xlu0 %397
        %399 = vrot.lane.b32.xlu0 %v372, 3
        %v400 = vpop.permute.xlu0 %399
        %vm403 = vcmask 154648
        %404 = vst.msk [vmem:[#allocation2 + $0x3] sm:$0xff] %vm403, %v398
        %405 = vst.msk [vmem:[#allocation2 + $0xb] sm:$0xff] %vm403, %v400
        %408 = vrot.lane.b32.xlu0 %v379, 3
        %v409 = vpop.permute.xlu0 %408
        %410 = vrot.lane.b32.xlu0 %v386, 3
        %v411 = vpop.permute.xlu0 %410
        %s414 = scalar_lea.vmem [#allocation2], 24
        %415 = vst.msk [vmem:[%s414 + $0x3] sm:$0xff] %vm403, %v409
        %416 = vst.msk [vmem:[%s414 + $0xb] sm:$0xff] %vm403, %v411
        %v417 = vld [vmem:[#allocation2] sm:$0xff]
        %v418 = vld [vmem:[#allocation2 + $0x8] sm:$0xff]
        %s419 = sld [smem:[#allocation4]]
        %v420 = vstv %s419
        %v421 = vmul.f32 %v420, %v417
        %v422 = vmul.f32 %v420, %v418
        %v423 = vadd.f32 %v421, 0.0
        %v424 = vadd.f32 %v422, 0.0
        %s425 = sld [smem:[#allocation4 + $0x1]]
        %v426 = vstv %s425
        %v427 = vmul.f32 %v426, %v417
        %v428 = vmul.f32 %v426, %v418
        %431 = vrot.lane.b32.xlu0 %v427, 127
        %v432 = vpop.permute.xlu0 %431
        %433 = vrot.lane.b32.xlu0 %v428, 127
        %v434 = vpop.permute.xlu0 %433
        %v437 = vadd.f32 %v423, %v432
        %v438 = vadd.f32 %v424, %v434
        %s439 = sld [smem:[#allocation4 + $0x2]]
        %v440 = vstv %s439
        %v441 = vmul.f32 %v440, %v417
        %v442 = vmul.f32 %v440, %v418
        %445 = vrot.lane.b32.xlu0 %v441, 126
        %v446 = vpop.permute.xlu0 %445
        %447 = vrot.lane.b32.xlu0 %v442, 126
        %v448 = vpop.permute.xlu0 %447
        %v451 = vadd.f32 %v437, %v446
        %v452 = vadd.f32 %v438, %v448
        %s453 = sld [smem:[#allocation4 + $0x3]]
        %v454 = vstv %s453
        %v455 = vmul.f32 %v454, %v417
        %v456 = vmul.f32 %v454, %v418
        %459 = vrot.lane.b32.xlu0 %v455, 125
        %v460 = vpop.permute.xlu0 %459
        %461 = vrot.lane.b32.xlu0 %v456, 125
        %v462 = vpop.permute.xlu0 %461
        %v465 = vadd.f32 %v451, %v460
        %v466 = vadd.f32 %v452, %v462
        %s467 = sld [smem:[#allocation4 + $0x4]]
        %v468 = vstv %s467
        %v469 = vmul.f32 %v468, %v417
        %v470 = vmul.f32 %v468, %v418
        %473 = vrot.lane.b32.xlu0 %v469, 124
        %v474 = vpop.permute.xlu0 %473
        %475 = vrot.lane.b32.xlu0 %v470, 124
        %v476 = vpop.permute.xlu0 %475
        %v479 = vadd.f32 %v465, %v474
        %v480 = vadd.f32 %v466, %v476
        %s481 = sld [smem:[#allocation4 + $0x5]]
        %v482 = vstv %s481
        %v483 = vmul.f32 %v482, %v417
        %v484 = vmul.f32 %v482, %v418
        %487 = vrot.lane.b32.xlu0 %v483, 123
        %v488 = vpop.permute.xlu0 %487
        %489 = vrot.lane.b32.xlu0 %v484, 123
        %v490 = vpop.permute.xlu0 %489
        %v493 = vadd.f32 %v479, %v488
        %v494 = vadd.f32 %v480, %v490
        %s495 = sld [smem:[#allocation4 + $0x6]]
        %v496 = vstv %s495
        %v497 = vmul.f32 %v496, %v417
        %v498 = vmul.f32 %v496, %v418
        %501 = vrot.lane.b32.xlu0 %v497, 122
        %v502 = vpop.permute.xlu0 %501
        %503 = vrot.lane.b32.xlu0 %v498, 122
        %v504 = vpop.permute.xlu0 %503
        %v507 = vadd.f32 %v493, %v502
        %v508 = vadd.f32 %v494, %v504
        %v509 = vld [vmem:[#allocation2 + $0x1] sm:$0xff]
        %v510 = vld [vmem:[#allocation2 + $0x9] sm:$0xff]
        %s511 = sld [smem:[#allocation4 + $0x7]]
        %v512 = vstv %s511
        %v513 = vmul.f32 %v512, %v509
        %v514 = vmul.f32 %v512, %v510
        %v515 = vadd.f32 %v507, %v513
        %v516 = vadd.f32 %v508, %v514
        %s517 = sld [smem:[#allocation4 + $0x8]]
        %v518 = vstv %s517
        %v519 = vmul.f32 %v518, %v509
        %v520 = vmul.f32 %v518, %v510
        %523 = vrot.lane.b32.xlu0 %v519, 127
        %v524 = vpop.permute.xlu0 %523
        %525 = vrot.lane.b32.xlu0 %v520, 127
        %v526 = vpop.permute.xlu0 %525
        %v529 = vadd.f32 %v515, %v524
        %v530 = vadd.f32 %v516, %v526
        %s531 = sld [smem:[#allocation4 + $0x9]]
        %v532 = vstv %s531
        %v533 = vmul.f32 %v532, %v509
        %v534 = vmul.f32 %v532, %v510
        %537 = vrot.lane.b32.xlu0 %v533, 126
        %v538 = vpop.permute.xlu0 %537
        %539 = vrot.lane.b32.xlu0 %v534, 126
        %v540 = vpop.permute.xlu0 %539
        %v543 = vadd.f32 %v529, %v538
        %v544 = vadd.f32 %v530, %v540
        %s545 = sld [smem:[#allocation4 + $0xa]]
        %v546 = vstv %s545
        %v547 = vmul.f32 %v546, %v509
        %v548 = vmul.f32 %v546, %v510
        %551 = vrot.lane.b32.xlu0 %v547, 125
        %v552 = vpop.permute.xlu0 %551
        %553 = vrot.lane.b32.xlu0 %v548, 125
        %v554 = vpop.permute.xlu0 %553
        %v557 = vadd.f32 %v543, %v552
        %v558 = vadd.f32 %v544, %v554
        %s559 = sld [smem:[#allocation4 + $0xb]]
        %v560 = vstv %s559
        %v561 = vmul.f32 %v560, %v509
        %v562 = vmul.f32 %v560, %v510
        %565 = vrot.lane.b32.xlu0 %v561, 124
        %v566 = vpop.permute.xlu0 %565
        %567 = vrot.lane.b32.xlu0 %v562, 124
        %v568 = vpop.permute.xlu0 %567
        %v571 = vadd.f32 %v557, %v566
        %v572 = vadd.f32 %v558, %v568
        %s573 = sld [smem:[#allocation4 + $0xc]]
        %v574 = vstv %s573
        %v575 = vmul.f32 %v574, %v509
        %v576 = vmul.f32 %v574, %v510
        %579 = vrot.lane.b32.xlu0 %v575, 123
        %v580 = vpop.permute.xlu0 %579
        %581 = vrot.lane.b32.xlu0 %v576, 123
        %v582 = vpop.permute.xlu0 %581
        %v585 = vadd.f32 %v571, %v580
        %v586 = vadd.f32 %v572, %v582
        %s587 = sld [smem:[#allocation4 + $0xd]]
        %v588 = vstv %s587
        %v589 = vmul.f32 %v588, %v509
        %v590 = vmul.f32 %v588, %v510
        %593 = vrot.lane.b32.xlu0 %v589, 122
        %v594 = vpop.permute.xlu0 %593
        %595 = vrot.lane.b32.xlu0 %v590, 122
        %v596 = vpop.permute.xlu0 %595
        %v599 = vadd.f32 %v585, %v594
        %v600 = vadd.f32 %v586, %v596
        %v601 = vld [vmem:[#allocation2 + $0x2] sm:$0xff]
        %v602 = vld [vmem:[#allocation2 + $0xa] sm:$0xff]
        %s603 = sld [smem:[#allocation4 + $0xe]]
        %v604 = vstv %s603
        %v605 = vmul.f32 %v604, %v601
        %v606 = vmul.f32 %v604, %v602
        %v607 = vadd.f32 %v599, %v605
        %v608 = vadd.f32 %v600, %v606
        %s609 = sld [smem:[#allocation4 + $0xf]]
        %v610 = vstv %s609
        %v611 = vmul.f32 %v610, %v601
        %v612 = vmul.f32 %v610, %v602
        %615 = vrot.lane.b32.xlu0 %v611, 127
        %v616 = vpop.permute.xlu0 %615
        %617 = vrot.lane.b32.xlu0 %v612, 127
        %v618 = vpop.permute.xlu0 %617
        %v621 = vadd.f32 %v607, %v616
        %v622 = vadd.f32 %v608, %v618
        %s623 = sld [smem:[#allocation4 + $0x10]]
        %v624 = vstv %s623
        %v625 = vmul.f32 %v624, %v601
        %v626 = vmul.f32 %v624, %v602
        %629 = vrot.lane.b32.xlu0 %v625, 126
        %v630 = vpop.permute.xlu0 %629
        %631 = vrot.lane.b32.xlu0 %v626, 126
        %v632 = vpop.permute.xlu0 %631
        %v635 = vadd.f32 %v621, %v630
        %v636 = vadd.f32 %v622, %v632
        %s637 = sld [smem:[#allocation4 + $0x11]]
        %v638 = vstv %s637
        %v639 = vmul.f32 %v638, %v601
        %v640 = vmul.f32 %v638, %v602
        %643 = vrot.lane.b32.xlu0 %v639, 125
        %v644 = vpop.permute.xlu0 %643
        %645 = vrot.lane.b32.xlu0 %v640, 125
        %v646 = vpop.permute.xlu0 %645
        %v649 = vadd.f32 %v635, %v644
        %v650 = vadd.f32 %v636, %v646
        %s651 = sld [smem:[#allocation4 + $0x12]]
        %v652 = vstv %s651
        %v653 = vmul.f32 %v652, %v601
        %v654 = vmul.f32 %v652, %v602
        %657 = vrot.lane.b32.xlu0 %v653, 124
        %v658 = vpop.permute.xlu0 %657
        %659 = vrot.lane.b32.xlu0 %v654, 124
        %v660 = vpop.permute.xlu0 %659
        %v663 = vadd.f32 %v649, %v658
        %v664 = vadd.f32 %v650, %v660
        %s665 = sld [smem:[#allocation4 + $0x13]]
        %v666 = vstv %s665
        %v667 = vmul.f32 %v666, %v601
        %v668 = vmul.f32 %v666, %v602
        %671 = vrot.lane.b32.xlu0 %v667, 123
        %v672 = vpop.permute.xlu0 %671
        %673 = vrot.lane.b32.xlu0 %v668, 123
        %v674 = vpop.permute.xlu0 %673
        %v677 = vadd.f32 %v663, %v672
        %v678 = vadd.f32 %v664, %v674
        %s679 = sld [smem:[#allocation4 + $0x14]]
        %v680 = vstv %s679
        %v681 = vmul.f32 %v680, %v601
        %v682 = vmul.f32 %v680, %v602
        %685 = vrot.lane.b32.xlu0 %v681, 122
        %v686 = vpop.permute.xlu0 %685
        %687 = vrot.lane.b32.xlu0 %v682, 122
        %v688 = vpop.permute.xlu0 %687
        %v691 = vadd.f32 %v677, %v686
        %v692 = vadd.f32 %v678, %v688
        %v693 = vld [vmem:[#allocation2 + $0x3] sm:$0xff]
        %v694 = vld [vmem:[#allocation2 + $0xb] sm:$0xff]
        %s695 = sld [smem:[#allocation4 + $0x15]]
        %v696 = vstv %s695
        %v697 = vmul.f32 %v696, %v693
        %v698 = vmul.f32 %v696, %v694
        %v699 = vadd.f32 %v691, %v697
        %v700 = vadd.f32 %v692, %v698
        %s701 = sld [smem:[#allocation4 + $0x16]]
        %v702 = vstv %s701
        %v703 = vmul.f32 %v702, %v693
        %v704 = vmul.f32 %v702, %v694
        %707 = vrot.lane.b32.xlu0 %v703, 127
        %v708 = vpop.permute.xlu0 %707
        %709 = vrot.lane.b32.xlu0 %v704, 127
        %v710 = vpop.permute.xlu0 %709
        %v713 = vadd.f32 %v699, %v708
        %v714 = vadd.f32 %v700, %v710
        %s715 = sld [smem:[#allocation4 + $0x17]]
        %v716 = vstv %s715
        %v717 = vmul.f32 %v716, %v693
        %v718 = vmul.f32 %v716, %v694
        %721 = vrot.lane.b32.xlu0 %v717, 126
        %v722 = vpop.permute.xlu0 %721
        %723 = vrot.lane.b32.xlu0 %v718, 126
        %v724 = vpop.permute.xlu0 %723
        %v727 = vadd.f32 %v713, %v722
        %v728 = vadd.f32 %v714, %v724
        %s729 = sld [smem:[#allocation4 + $0x18]]
        %v730 = vstv %s729
        %v731 = vmul.f32 %v730, %v693
        %v732 = vmul.f32 %v730, %v694
        %735 = vrot.lane.b32.xlu0 %v731, 125
        %v736 = vpop.permute.xlu0 %735
        %737 = vrot.lane.b32.xlu0 %v732, 125
        %v738 = vpop.permute.xlu0 %737
        %v741 = vadd.f32 %v727, %v736
        %v742 = vadd.f32 %v728, %v738
        %s743 = sld [smem:[#allocation4 + $0x19]]
        %v744 = vstv %s743
        %v745 = vmul.f32 %v744, %v693
        %v746 = vmul.f32 %v744, %v694
        %749 = vrot.lane.b32.xlu0 %v745, 124
        %v750 = vpop.permute.xlu0 %749
        %751 = vrot.lane.b32.xlu0 %v746, 124
        %v752 = vpop.permute.xlu0 %751
        %v755 = vadd.f32 %v741, %v750
        %v756 = vadd.f32 %v742, %v752
        %s757 = sld [smem:[#allocation4 + $0x1a]]
        %v758 = vstv %s757
        %v759 = vmul.f32 %v758, %v693
        %v760 = vmul.f32 %v758, %v694
        %763 = vrot.lane.b32.xlu0 %v759, 123
        %v764 = vpop.permute.xlu0 %763
        %765 = vrot.lane.b32.xlu0 %v760, 123
        %v766 = vpop.permute.xlu0 %765
        %v769 = vadd.f32 %v755, %v764
        %v770 = vadd.f32 %v756, %v766
        %s771 = sld [smem:[#allocation4 + $0x1b]]
        %v772 = vstv %s771
        %v773 = vmul.f32 %v772, %v693
        %v774 = vmul.f32 %v772, %v694
        %777 = vrot.lane.b32.xlu0 %v773, 122
        %v778 = vpop.permute.xlu0 %777
        %779 = vrot.lane.b32.xlu0 %v774, 122
        %v780 = vpop.permute.xlu0 %779
        %v783 = vadd.f32 %v769, %v778
        %v784 = vadd.f32 %v770, %v780
        %v785 = vld [vmem:[#allocation2 + $0x4] sm:$0xff]
        %v786 = vld [vmem:[#allocation2 + $0xc] sm:$0xff]
        %s787 = sld [smem:[#allocation4 + $0x1c]]
        %v788 = vstv %s787
        %v789 = vmul.f32 %v788, %v785
        %v790 = vmul.f32 %v788, %v786
        %v791 = vadd.f32 %v783, %v789
        %v792 = vadd.f32 %v784, %v790
        %s793 = sld [smem:[#allocation4 + $0x1d]]
        %v794 = vstv %s793
        %v795 = vmul.f32 %v794, %v785
        %v796 = vmul.f32 %v794, %v786
        %799 = vrot.lane.b32.xlu0 %v795, 127
        %v800 = vpop.permute.xlu0 %799
        %801 = vrot.lane.b32.xlu0 %v796, 127
        %v802 = vpop.permute.xlu0 %801
        %v805 = vadd.f32 %v791, %v800
        %v806 = vadd.f32 %v792, %v802
        %s807 = sld [smem:[#allocation4 + $0x1e]]
        %v808 = vstv %s807
        %v809 = vmul.f32 %v808, %v785
        %v810 = vmul.f32 %v808, %v786
        %813 = vrot.lane.b32.xlu0 %v809, 126
        %v814 = vpop.permute.xlu0 %813
        %815 = vrot.lane.b32.xlu0 %v810, 126
        %v816 = vpop.permute.xlu0 %815
        %v819 = vadd.f32 %v805, %v814
        %v820 = vadd.f32 %v806, %v816
        %s821 = sld [smem:[#allocation4 + $0x1f]]
        %v822 = vstv %s821
        %v823 = vmul.f32 %v822, %v785
        %v824 = vmul.f32 %v822, %v786
        %827 = vrot.lane.b32.xlu0 %v823, 125
        %v828 = vpop.permute.xlu0 %827
        %829 = vrot.lane.b32.xlu0 %v824, 125
        %v830 = vpop.permute.xlu0 %829
        %v833 = vadd.f32 %v819, %v828
        %v834 = vadd.f32 %v820, %v830
        %s835 = sld [smem:[#allocation4 + $0x20]]
        %v836 = vstv %s835
        %v837 = vmul.f32 %v836, %v785
        %v838 = vmul.f32 %v836, %v786
        %841 = vrot.lane.b32.xlu0 %v837, 124
        %v842 = vpop.permute.xlu0 %841
        %843 = vrot.lane.b32.xlu0 %v838, 124
        %v844 = vpop.permute.xlu0 %843
        %v847 = vadd.f32 %v833, %v842
        %v848 = vadd.f32 %v834, %v844
        %s849 = sld [smem:[#allocation4 + $0x21]]
        %v850 = vstv %s849
        %v851 = vmul.f32 %v850, %v785
        %v852 = vmul.f32 %v850, %v786
        %855 = vrot.lane.b32.xlu0 %v851, 123
        %v856 = vpop.permute.xlu0 %855
        %857 = vrot.lane.b32.xlu0 %v852, 123
        %v858 = vpop.permute.xlu0 %857
        %v861 = vadd.f32 %v847, %v856
        %v862 = vadd.f32 %v848, %v858
        %s863 = sld [smem:[#allocation4 + $0x22]]
        %v864 = vstv %s863
        %v865 = vmul.f32 %v864, %v785
        %v866 = vmul.f32 %v864, %v786
        %869 = vrot.lane.b32.xlu0 %v865, 122
        %v870 = vpop.permute.xlu0 %869
        %871 = vrot.lane.b32.xlu0 %v866, 122
        %v872 = vpop.permute.xlu0 %871
        %v875 = vadd.f32 %v861, %v870
        %v876 = vadd.f32 %v862, %v872
        %v877 = vld [vmem:[#allocation2 + $0x5] sm:$0xff]
        %v878 = vld [vmem:[#allocation2 + $0xd] sm:$0xff]
        %s879 = sld [smem:[#allocation4 + $0x23]]
        %v880 = vstv %s879
        %v881 = vmul.f32 %v880, %v877
        %v882 = vmul.f32 %v880, %v878
        %v883 = vadd.f32 %v875, %v881
        %v884 = vadd.f32 %v876, %v882
        %s885 = sld [smem:[#allocation4 + $0x24]]
        %v886 = vstv %s885
        %v887 = vmul.f32 %v886, %v877
        %v888 = vmul.f32 %v886, %v878
        %891 = vrot.lane.b32.xlu0 %v887, 127
        %v892 = vpop.permute.xlu0 %891
        %893 = vrot.lane.b32.xlu0 %v888, 127
        %v894 = vpop.permute.xlu0 %893
        %v897 = vadd.f32 %v883, %v892
        %v898 = vadd.f32 %v884, %v894
        %s899 = sld [smem:[#allocation4 + $0x25]]
        %v900 = vstv %s899
        %v901 = vmul.f32 %v900, %v877
        %v902 = vmul.f32 %v900, %v878
        %905 = vrot.lane.b32.xlu0 %v901, 126
        %v906 = vpop.permute.xlu0 %905
        %907 = vrot.lane.b32.xlu0 %v902, 126
        %v908 = vpop.permute.xlu0 %907
        %v911 = vadd.f32 %v897, %v906
        %v912 = vadd.f32 %v898, %v908
        %s913 = sld [smem:[#allocation4 + $0x26]]
        %v914 = vstv %s913
        %v915 = vmul.f32 %v914, %v877
        %v916 = vmul.f32 %v914, %v878
        %919 = vrot.lane.b32.xlu0 %v915, 125
        %v920 = vpop.permute.xlu0 %919
        %921 = vrot.lane.b32.xlu0 %v916, 125
        %v922 = vpop.permute.xlu0 %921
        %v925 = vadd.f32 %v911, %v920
        %v926 = vadd.f32 %v912, %v922
        %s927 = sld [smem:[#allocation4 + $0x27]]
        %v928 = vstv %s927
        %v929 = vmul.f32 %v928, %v877
        %v930 = vmul.f32 %v928, %v878
        %933 = vrot.lane.b32.xlu0 %v929, 124
        %v934 = vpop.permute.xlu0 %933
        %935 = vrot.lane.b32.xlu0 %v930, 124
        %v936 = vpop.permute.xlu0 %935
        %v939 = vadd.f32 %v925, %v934
        %v940 = vadd.f32 %v926, %v936
        %s941 = sld [smem:[#allocation4 + $0x28]]
        %v942 = vstv %s941
        %v943 = vmul.f32 %v942, %v877
        %v944 = vmul.f32 %v942, %v878
        %947 = vrot.lane.b32.xlu0 %v943, 123
        %v948 = vpop.permute.xlu0 %947
        %949 = vrot.lane.b32.xlu0 %v944, 123
        %v950 = vpop.permute.xlu0 %949
        %v953 = vadd.f32 %v939, %v948
        %v954 = vadd.f32 %v940, %v950
        %s955 = sld [smem:[#allocation4 + $0x29]]
        %v956 = vstv %s955
        %v957 = vmul.f32 %v956, %v877
        %v958 = vmul.f32 %v956, %v878
        %961 = vrot.lane.b32.xlu0 %v957, 122
        %v962 = vpop.permute.xlu0 %961
        %963 = vrot.lane.b32.xlu0 %v958, 122
        %v964 = vpop.permute.xlu0 %963
        %v967 = vadd.f32 %v953, %v962
        %v968 = vadd.f32 %v954, %v964
        %v969 = vld [vmem:[#allocation2 + $0x6] sm:$0xff]
        %v970 = vld [vmem:[#allocation2 + $0xe] sm:$0xff]
        %s971 = sld [smem:[#allocation4 + $0x2a]]
        %v972 = vstv %s971
        %v973 = vmul.f32 %v972, %v969
        %v974 = vmul.f32 %v972, %v970
        %v975 = vadd.f32 %v967, %v973
        %v976 = vadd.f32 %v968, %v974
        %s977 = sld [smem:[#allocation4 + $0x2b]]
        %v978 = vstv %s977
        %v979 = vmul.f32 %v978, %v969
        %v980 = vmul.f32 %v978, %v970
        %983 = vrot.lane.b32.xlu0 %v979, 127
        %v984 = vpop.permute.xlu0 %983
        %985 = vrot.lane.b32.xlu0 %v980, 127
        %v986 = vpop.permute.xlu0 %985
        %v989 = vadd.f32 %v975, %v984
        %v990 = vadd.f32 %v976, %v986
        %s991 = sld [smem:[#allocation4 + $0x2c]]
        %v992 = vstv %s991
        %v993 = vmul.f32 %v992, %v969
        %v994 = vmul.f32 %v992, %v970
        %997 = vrot.lane.b32.xlu0 %v993, 126
        %v998 = vpop.permute.xlu0 %997
        %999 = vrot.lane.b32.xlu0 %v994, 126
        %v1000 = vpop.permute.xlu0 %999
        %v1003 = vadd.f32 %v989, %v998
        %v1004 = vadd.f32 %v990, %v1000
        %s1005 = sld [smem:[#allocation4 + $0x2d]]
        %v1006 = vstv %s1005
        %v1007 = vmul.f32 %v1006, %v969
        %v1008 = vmul.f32 %v1006, %v970
        %1011 = vrot.lane.b32.xlu0 %v1007, 125
        %v1012 = vpop.permute.xlu0 %1011
        %1013 = vrot.lane.b32.xlu0 %v1008, 125
        %v1014 = vpop.permute.xlu0 %1013
        %v1017 = vadd.f32 %v1003, %v1012
        %v1018 = vadd.f32 %v1004, %v1014
        %s1019 = sld [smem:[#allocation4 + $0x2e]]
        %v1020 = vstv %s1019
        %v1021 = vmul.f32 %v1020, %v969
        %v1022 = vmul.f32 %v1020, %v970
        %1025 = vrot.lane.b32.xlu0 %v1021, 124
        %v1026 = vpop.permute.xlu0 %1025
        %1027 = vrot.lane.b32.xlu0 %v1022, 124
        %v1028 = vpop.permute.xlu0 %1027
        %v1031 = vadd.f32 %v1017, %v1026
        %v1032 = vadd.f32 %v1018, %v1028
        %s1033 = sld [smem:[#allocation4 + $0x2f]]
        %v1034 = vstv %s1033
        %v1035 = vmul.f32 %v1034, %v969
        %v1036 = vmul.f32 %v1034, %v970
        %1039 = vrot.lane.b32.xlu0 %v1035, 123
        %v1040 = vpop.permute.xlu0 %1039
        %1041 = vrot.lane.b32.xlu0 %v1036, 123
        %v1042 = vpop.permute.xlu0 %1041
        %v1045 = vadd.f32 %v1031, %v1040
        %v1046 = vadd.f32 %v1032, %v1042
        %s1047 = sld [smem:[#allocation4 + $0x30]]
        %v1048 = vstv %s1047
        %v1049 = vmul.f32 %v1048, %v969
        %v1050 = vmul.f32 %v1048, %v970
        %1053 = vrot.lane.b32.xlu0 %v1049, 122
        %v1054 = vpop.permute.xlu0 %1053
        %1055 = vrot.lane.b32.xlu0 %v1050, 122
        %v1056 = vpop.permute.xlu0 %1055
        %v1059 = vadd.f32 %v1045, %v1054
        %v1060 = vadd.f32 %v1046, %v1056
        %v1061 = vld [vmem:[%s414] sm:$0xff]
        %v1062 = vld [vmem:[%s414 + $0x8] sm:$0xff]
        %s1063 = sld [smem:[#allocation4 + $0x31]]
        %v1064 = vstv %s1063
        %v1065 = vmul.f32 %v1064, %v1061
        %v1066 = vmul.f32 %v1064, %v1062
        %v1067 = vadd.f32 %v1059, %v1065
        %v1068 = vadd.f32 %v1060, %v1066
        %s1069 = sld [smem:[#allocation4 + $0x32]]
        %v1070 = vstv %s1069
        %v1071 = vmul.f32 %v1070, %v1061
        %v1072 = vmul.f32 %v1070, %v1062
        %1075 = vrot.lane.b32.xlu0 %v1071, 127
        %v1076 = vpop.permute.xlu0 %1075
        %1077 = vrot.lane.b32.xlu0 %v1072, 127
        %v1078 = vpop.permute.xlu0 %1077
        %v1081 = vadd.f32 %v1067, %v1076
        %v1082 = vadd.f32 %v1068, %v1078
        %s1083 = sld [smem:[#allocation4 + $0x33]]
        %v1084 = vstv %s1083
        %v1085 = vmul.f32 %v1084, %v1061
        %v1086 = vmul.f32 %v1084, %v1062
        %1089 = vrot.lane.b32.xlu0 %v1085, 126
        %v1090 = vpop.permute.xlu0 %1089
        %1091 = vrot.lane.b32.xlu0 %v1086, 126
        %v1092 = vpop.permute.xlu0 %1091
        %v1095 = vadd.f32 %v1081, %v1090
        %v1096 = vadd.f32 %v1082, %v1092
        %s1097 = sld [smem:[#allocation4 + $0x34]]
        %v1098 = vstv %s1097
        %v1099 = vmul.f32 %v1098, %v1061
        %v1100 = vmul.f32 %v1098, %v1062
        %1103 = vrot.lane.b32.xlu0 %v1099, 125
        %v1104 = vpop.permute.xlu0 %1103
        %1105 = vrot.lane.b32.xlu0 %v1100, 125
        %v1106 = vpop.permute.xlu0 %1105
        %v1109 = vadd.f32 %v1095, %v1104
        %v1110 = vadd.f32 %v1096, %v1106
        %s1111 = sld [smem:[#allocation4 + $0x35]]
        %v1112 = vstv %s1111
        %v1113 = vmul.f32 %v1112, %v1061
        %v1114 = vmul.f32 %v1112, %v1062
        %1117 = vrot.lane.b32.xlu0 %v1113, 124
        %v1118 = vpop.permute.xlu0 %1117
        %1119 = vrot.lane.b32.xlu0 %v1114, 124
        %v1120 = vpop.permute.xlu0 %1119
        %v1123 = vadd.f32 %v1109, %v1118
        %v1124 = vadd.f32 %v1110, %v1120
        %s1125 = sld [smem:[#allocation4 + $0x36]]
        %v1126 = vstv %s1125
        %v1127 = vmul.f32 %v1126, %v1061
        %v1128 = vmul.f32 %v1126, %v1062
        %1131 = vrot.lane.b32.xlu0 %v1127, 123
        %v1132 = vpop.permute.xlu0 %1131
        %1133 = vrot.lane.b32.xlu0 %v1128, 123
        %v1134 = vpop.permute.xlu0 %1133
        %v1137 = vadd.f32 %v1123, %v1132
        %v1138 = vadd.f32 %v1124, %v1134
        %s1139 = sld [smem:[#allocation4 + $0x37]]
        %v1140 = vstv %s1139
        %v1141 = vmul.f32 %v1140, %v1061
        %v1142 = vmul.f32 %v1140, %v1062
        %1145 = vrot.lane.b32.xlu0 %v1141, 122
        %v1146 = vpop.permute.xlu0 %1145
        %1147 = vrot.lane.b32.xlu0 %v1142, 122
        %v1148 = vpop.permute.xlu0 %1147
        %v1151 = vadd.f32 %v1137, %v1146
        %v1152 = vadd.f32 %v1138, %v1148
        %v1153 = vld [vmem:[%s414 + $0x1] sm:$0xff]
        %v1154 = vld [vmem:[%s414 + $0x9] sm:$0xff]
        %s1155 = sld [smem:[#allocation4 + $0x38]]
        %v1156 = vstv %s1155
        %v1157 = vmul.f32 %v1156, %v1153
        %v1158 = vmul.f32 %v1156, %v1154
        %v1159 = vadd.f32 %v1151, %v1157
        %v1160 = vadd.f32 %v1152, %v1158
        %s1161 = sld [smem:[#allocation4 + $0x39]]
        %v1162 = vstv %s1161
        %v1163 = vmul.f32 %v1162, %v1153
        %v1164 = vmul.f32 %v1162, %v1154
        %1167 = vrot.lane.b32.xlu0 %v1163, 127
        %v1168 = vpop.permute.xlu0 %1167
        %1169 = vrot.lane.b32.xlu0 %v1164, 127
        %v1170 = vpop.permute.xlu0 %1169
        %v1173 = vadd.f32 %v1159, %v1168
        %v1174 = vadd.f32 %v1160, %v1170
        %s1175 = sld [smem:[#allocation4 + $0x3a]]
        %v1176 = vstv %s1175
        %v1177 = vmul.f32 %v1176, %v1153
        %v1178 = vmul.f32 %v1176, %v1154
        %1181 = vrot.lane.b32.xlu0 %v1177, 126
        %v1182 = vpop.permute.xlu0 %1181
        %1183 = vrot.lane.b32.xlu0 %v1178, 126
        %v1184 = vpop.permute.xlu0 %1183
        %v1187 = vadd.f32 %v1173, %v1182
        %v1188 = vadd.f32 %v1174, %v1184
        %s1189 = sld [smem:[#allocation4 + $0x3b]]
        %v1190 = vstv %s1189
        %v1191 = vmul.f32 %v1190, %v1153
        %v1192 = vmul.f32 %v1190, %v1154
        %1195 = vrot.lane.b32.xlu0 %v1191, 125
        %v1196 = vpop.permute.xlu0 %1195
        %1197 = vrot.lane.b32.xlu0 %v1192, 125
        %v1198 = vpop.permute.xlu0 %1197
        %v1201 = vadd.f32 %v1187, %v1196
        %v1202 = vadd.f32 %v1188, %v1198
        %s1203 = sld [smem:[#allocation4 + $0x3c]]
        %v1204 = vstv %s1203
        %v1205 = vmul.f32 %v1204, %v1153
        %v1206 = vmul.f32 %v1204, %v1154
        %1209 = vrot.lane.b32.xlu0 %v1205, 124
        %v1210 = vpop.permute.xlu0 %1209
        %1211 = vrot.lane.b32.xlu0 %v1206, 124
        %v1212 = vpop.permute.xlu0 %1211
        %v1215 = vadd.f32 %v1201, %v1210
        %v1216 = vadd.f32 %v1202, %v1212
        %s1217 = sld [smem:[#allocation4 + $0x3d]]
        %v1218 = vstv %s1217
        %v1219 = vmul.f32 %v1218, %v1153
        %v1220 = vmul.f32 %v1218, %v1154
        %1223 = vrot.lane.b32.xlu0 %v1219, 123
        %v1224 = vpop.permute.xlu0 %1223
        %1225 = vrot.lane.b32.xlu0 %v1220, 123
        %v1226 = vpop.permute.xlu0 %1225
        %v1229 = vadd.f32 %v1215, %v1224
        %v1230 = vadd.f32 %v1216, %v1226
        %s1231 = sld [smem:[#allocation4 + $0x3e]]
        %v1232 = vstv %s1231
        %v1233 = vmul.f32 %v1232, %v1153
        %v1234 = vmul.f32 %v1232, %v1154
        %1237 = vrot.lane.b32.xlu0 %v1233, 122
        %v1238 = vpop.permute.xlu0 %1237
        %1239 = vrot.lane.b32.xlu0 %v1234, 122
        %v1240 = vpop.permute.xlu0 %1239
        %v1243 = vadd.f32 %v1229, %v1238
        %v1244 = vadd.f32 %v1230, %v1240
        %v1245 = vld [vmem:[%s414 + $0x2] sm:$0xff]
        %v1246 = vld [vmem:[%s414 + $0xa] sm:$0xff]
        %s1247 = sld [smem:[#allocation4 + $0x3f]]
        %v1248 = vstv %s1247
        %v1249 = vmul.f32 %v1248, %v1245
        %v1250 = vmul.f32 %v1248, %v1246
        %v1251 = vadd.f32 %v1243, %v1249
        %v1252 = vadd.f32 %v1244, %v1250
        %s1253 = sld [smem:[#allocation4 + $0x40]]
        %v1254 = vstv %s1253
        %v1255 = vmul.f32 %v1254, %v1245
        %v1256 = vmul.f32 %v1254, %v1246
        %1259 = vrot.lane.b32.xlu0 %v1255, 127
        %v1260 = vpop.permute.xlu0 %1259
        %1261 = vrot.lane.b32.xlu0 %v1256, 127
        %v1262 = vpop.permute.xlu0 %1261
        %v1265 = vadd.f32 %v1251, %v1260
        %v1266 = vadd.f32 %v1252, %v1262
        %s1267 = sld [smem:[#allocation4 + $0x41]]
        %v1268 = vstv %s1267
        %v1269 = vmul.f32 %v1268, %v1245
        %v1270 = vmul.f32 %v1268, %v1246
        %1273 = vrot.lane.b32.xlu0 %v1269, 126
        %v1274 = vpop.permute.xlu0 %1273
        %1275 = vrot.lane.b32.xlu0 %v1270, 126
        %v1276 = vpop.permute.xlu0 %1275
        %v1279 = vadd.f32 %v1265, %v1274
        %v1280 = vadd.f32 %v1266, %v1276
        %s1281 = sld [smem:[#allocation4 + $0x42]]
        %v1282 = vstv %s1281
        %v1283 = vmul.f32 %v1282, %v1245
        %v1284 = vmul.f32 %v1282, %v1246
        %1287 = vrot.lane.b32.xlu0 %v1283, 125
        %v1288 = vpop.permute.xlu0 %1287
        %1289 = vrot.lane.b32.xlu0 %v1284, 125
        %v1290 = vpop.permute.xlu0 %1289
        %v1293 = vadd.f32 %v1279, %v1288
        %v1294 = vadd.f32 %v1280, %v1290
        %s1295 = sld [smem:[#allocation4 + $0x43]]
        %v1296 = vstv %s1295
        %v1297 = vmul.f32 %v1296, %v1245
        %v1298 = vmul.f32 %v1296, %v1246
        %1301 = vrot.lane.b32.xlu0 %v1297, 124
        %v1302 = vpop.permute.xlu0 %1301
        %1303 = vrot.lane.b32.xlu0 %v1298, 124
        %v1304 = vpop.permute.xlu0 %1303
        %v1307 = vadd.f32 %v1293, %v1302
        %v1308 = vadd.f32 %v1294, %v1304
        %s1309 = sld [smem:[#allocation4 + $0x44]]
        %v1310 = vstv %s1309
        %v1311 = vmul.f32 %v1310, %v1245
        %v1312 = vmul.f32 %v1310, %v1246
        %1315 = vrot.lane.b32.xlu0 %v1311, 123
        %v1316 = vpop.permute.xlu0 %1315
        %1317 = vrot.lane.b32.xlu0 %v1312, 123
        %v1318 = vpop.permute.xlu0 %1317
        %v1321 = vadd.f32 %v1307, %v1316
        %v1322 = vadd.f32 %v1308, %v1318
        %s1323 = sld [smem:[#allocation4 + $0x45]]
        %v1324 = vstv %s1323
        %v1325 = vmul.f32 %v1324, %v1245
        %v1326 = vmul.f32 %v1324, %v1246
        %1329 = vrot.lane.b32.xlu0 %v1325, 122
        %v1330 = vpop.permute.xlu0 %1329
        %1331 = vrot.lane.b32.xlu0 %v1326, 122
        %v1332 = vpop.permute.xlu0 %1331
        %v1335 = vadd.f32 %v1321, %v1330
        %v1336 = vadd.f32 %v1322, %v1332
        %v1337 = vld [vmem:[%s414 + $0x3] sm:$0xff]
        %v1338 = vld [vmem:[%s414 + $0xb] sm:$0xff]
        %s1339 = sld [smem:[#allocation4 + $0x46]]
        %v1340 = vstv %s1339
        %v1341 = vmul.f32 %v1340, %v1337
        %v1342 = vmul.f32 %v1340, %v1338
        %v1343 = vadd.f32 %v1335, %v1341
        %v1344 = vadd.f32 %v1336, %v1342
        %s1345 = sld [smem:[#allocation4 + $0x47]]
        %v1346 = vstv %s1345
        %v1347 = vmul.f32 %v1346, %v1337
        %v1348 = vmul.f32 %v1346, %v1338
        %1351 = vrot.lane.b32.xlu0 %v1347, 127
        %v1352 = vpop.permute.xlu0 %1351
        %1353 = vrot.lane.b32.xlu0 %v1348, 127
        %v1354 = vpop.permute.xlu0 %1353
        %v1357 = vadd.f32 %v1343, %v1352
        %v1358 = vadd.f32 %v1344, %v1354
        %s1359 = sld [smem:[#allocation4 + $0x48]]
        %v1360 = vstv %s1359
        %v1361 = vmul.f32 %v1360, %v1337
        %v1362 = vmul.f32 %v1360, %v1338
        %1365 = vrot.lane.b32.xlu0 %v1361, 126
        %v1366 = vpop.permute.xlu0 %1365
        %1367 = vrot.lane.b32.xlu0 %v1362, 126
        %v1368 = vpop.permute.xlu0 %1367
        %v1371 = vadd.f32 %v1357, %v1366
        %v1372 = vadd.f32 %v1358, %v1368
        %s1373 = sld [smem:[#allocation4 + $0x49]]
        %v1374 = vstv %s1373
        %v1375 = vmul.f32 %v1374, %v1337
        %v1376 = vmul.f32 %v1374, %v1338
        %1379 = vrot.lane.b32.xlu0 %v1375, 125
        %v1380 = vpop.permute.xlu0 %1379
        %1381 = vrot.lane.b32.xlu0 %v1376, 125
        %v1382 = vpop.permute.xlu0 %1381
        %v1385 = vadd.f32 %v1371, %v1380
        %v1386 = vadd.f32 %v1372, %v1382
        %s1387 = sld [smem:[#allocation4 + $0x4a]]
        %v1388 = vstv %s1387
        %v1389 = vmul.f32 %v1388, %v1337
        %v1390 = vmul.f32 %v1388, %v1338
        %1393 = vrot.lane.b32.xlu0 %v1389, 124
        %v1394 = vpop.permute.xlu0 %1393
        %1395 = vrot.lane.b32.xlu0 %v1390, 124
        %v1396 = vpop.permute.xlu0 %1395
        %v1399 = vadd.f32 %v1385, %v1394
        %v1400 = vadd.f32 %v1386, %v1396
        %s1401 = sld [smem:[#allocation4 + $0x4b]]
        %v1402 = vstv %s1401
        %v1403 = vmul.f32 %v1402, %v1337
        %v1404 = vmul.f32 %v1402, %v1338
        %1407 = vrot.lane.b32.xlu0 %v1403, 123
        %v1408 = vpop.permute.xlu0 %1407
        %1409 = vrot.lane.b32.xlu0 %v1404, 123
        %v1410 = vpop.permute.xlu0 %1409
        %v1413 = vadd.f32 %v1399, %v1408
        %v1414 = vadd.f32 %v1400, %v1410
        %s1415 = sld [smem:[#allocation4 + $0x4c]]
        %v1416 = vstv %s1415
        %v1417 = vmul.f32 %v1416, %v1337
        %v1418 = vmul.f32 %v1416, %v1338
        %1421 = vrot.lane.b32.xlu0 %v1417, 122
        %v1422 = vpop.permute.xlu0 %1421
        %1423 = vrot.lane.b32.xlu0 %v1418, 122
        %v1424 = vpop.permute.xlu0 %1423
        %v1427 = vadd.f32 %v1413, %v1422
        %v1428 = vadd.f32 %v1414, %v1424
        %v1429 = vld [vmem:[%s414 + $0x4] sm:$0xff]
        %v1430 = vld [vmem:[%s414 + $0xc] sm:$0xff]
        %s1431 = sld [smem:[#allocation4 + $0x4d]]
        %v1432 = vstv %s1431
        %v1433 = vmul.f32 %v1432, %v1429
        %v1434 = vmul.f32 %v1432, %v1430
        %v1435 = vadd.f32 %v1427, %v1433
        %v1436 = vadd.f32 %v1428, %v1434
        %s1437 = sld [smem:[#allocation4 + $0x4e]]
        %v1438 = vstv %s1437
        %v1439 = vmul.f32 %v1438, %v1429
        %v1440 = vmul.f32 %v1438, %v1430
        %1443 = vrot.lane.b32.xlu0 %v1439, 127
        %v1444 = vpop.permute.xlu0 %1443
        %1445 = vrot.lane.b32.xlu0 %v1440, 127
        %v1446 = vpop.permute.xlu0 %1445
        %v1449 = vadd.f32 %v1435, %v1444
        %v1450 = vadd.f32 %v1436, %v1446
        %s1451 = sld [smem:[#allocation4 + $0x4f]]
        %v1452 = vstv %s1451
        %v1453 = vmul.f32 %v1452, %v1429
        %v1454 = vmul.f32 %v1452, %v1430
        %1457 = vrot.lane.b32.xlu0 %v1453, 126
        %v1458 = vpop.permute.xlu0 %1457
        %1459 = vrot.lane.b32.xlu0 %v1454, 126
        %v1460 = vpop.permute.xlu0 %1459
        %v1463 = vadd.f32 %v1449, %v1458
        %v1464 = vadd.f32 %v1450, %v1460
        %s1465 = sld [smem:[#allocation4 + $0x50]]
        %v1466 = vstv %s1465
        %v1467 = vmul.f32 %v1466, %v1429
        %v1468 = vmul.f32 %v1466, %v1430
        %1471 = vrot.lane.b32.xlu0 %v1467, 125
        %v1472 = vpop.permute.xlu0 %1471
        %1473 = vrot.lane.b32.xlu0 %v1468, 125
        %v1474 = vpop.permute.xlu0 %1473
        %v1477 = vadd.f32 %v1463, %v1472
        %v1478 = vadd.f32 %v1464, %v1474
        %s1479 = sld [smem:[#allocation4 + $0x51]]
        %v1480 = vstv %s1479
        %v1481 = vmul.f32 %v1480, %v1429
        %v1482 = vmul.f32 %v1480, %v1430
        %1485 = vrot.lane.b32.xlu0 %v1481, 124
        %v1486 = vpop.permute.xlu0 %1485
        %1487 = vrot.lane.b32.xlu0 %v1482, 124
        %v1488 = vpop.permute.xlu0 %1487
        %v1491 = vadd.f32 %v1477, %v1486
        %v1492 = vadd.f32 %v1478, %v1488
        %s1493 = sld [smem:[#allocation4 + $0x52]]
        %v1494 = vstv %s1493
        %v1495 = vmul.f32 %v1494, %v1429
        %v1496 = vmul.f32 %v1494, %v1430
        %1499 = vrot.lane.b32.xlu0 %v1495, 123
        %v1500 = vpop.permute.xlu0 %1499
        %1501 = vrot.lane.b32.xlu0 %v1496, 123
        %v1502 = vpop.permute.xlu0 %1501
        %v1505 = vadd.f32 %v1491, %v1500
        %v1506 = vadd.f32 %v1492, %v1502
        %s1507 = sld [smem:[#allocation4 + $0x53]]
        %v1508 = vstv %s1507
        %v1509 = vmul.f32 %v1508, %v1429
        %v1510 = vmul.f32 %v1508, %v1430
        %1513 = vrot.lane.b32.xlu0 %v1509, 122
        %v1514 = vpop.permute.xlu0 %1513
        %1515 = vrot.lane.b32.xlu0 %v1510, 122
        %v1516 = vpop.permute.xlu0 %1515
        %v1519 = vadd.f32 %v1505, %v1514
        %v1520 = vadd.f32 %v1506, %v1516
        %v1521 = vld [vmem:[%s414 + $0x5] sm:$0xff]
        %v1522 = vld [vmem:[%s414 + $0xd] sm:$0xff]
        %s1523 = sld [smem:[#allocation4 + $0x54]]
        %v1524 = vstv %s1523
        %v1525 = vmul.f32 %v1524, %v1521
        %v1526 = vmul.f32 %v1524, %v1522
        %v1527 = vadd.f32 %v1519, %v1525
        %v1528 = vadd.f32 %v1520, %v1526
        %s1529 = sld [smem:[#allocation4 + $0x55]]
        %v1530 = vstv %s1529
        %v1531 = vmul.f32 %v1530, %v1521
        %v1532 = vmul.f32 %v1530, %v1522
        %1535 = vrot.lane.b32.xlu0 %v1531, 127
        %v1536 = vpop.permute.xlu0 %1535
        %1537 = vrot.lane.b32.xlu0 %v1532, 127
        %v1538 = vpop.permute.xlu0 %1537
        %v1541 = vadd.f32 %v1527, %v1536
        %v1542 = vadd.f32 %v1528, %v1538
        %s1543 = sld [smem:[#allocation4 + $0x56]]
        %v1544 = vstv %s1543
        %v1545 = vmul.f32 %v1544, %v1521
        %v1546 = vmul.f32 %v1544, %v1522
        %1549 = vrot.lane.b32.xlu0 %v1545, 126
        %v1550 = vpop.permute.xlu0 %1549
        %1551 = vrot.lane.b32.xlu0 %v1546, 126
        %v1552 = vpop.permute.xlu0 %1551
        %v1555 = vadd.f32 %v1541, %v1550
        %v1556 = vadd.f32 %v1542, %v1552
        %s1557 = sld [smem:[#allocation4 + $0x57]]
        %v1558 = vstv %s1557
        %v1559 = vmul.f32 %v1558, %v1521
        %v1560 = vmul.f32 %v1558, %v1522
        %1563 = vrot.lane.b32.xlu0 %v1559, 125
        %v1564 = vpop.permute.xlu0 %1563
        %1565 = vrot.lane.b32.xlu0 %v1560, 125
        %v1566 = vpop.permute.xlu0 %1565
        %v1569 = vadd.f32 %v1555, %v1564
        %v1570 = vadd.f32 %v1556, %v1566
        %s1571 = sld [smem:[#allocation4 + $0x58]]
        %v1572 = vstv %s1571
        %v1573 = vmul.f32 %v1572, %v1521
        %v1574 = vmul.f32 %v1572, %v1522
        %1577 = vrot.lane.b32.xlu0 %v1573, 124
        %v1578 = vpop.permute.xlu0 %1577
        %1579 = vrot.lane.b32.xlu0 %v1574, 124
        %v1580 = vpop.permute.xlu0 %1579
        %v1583 = vadd.f32 %v1569, %v1578
        %v1584 = vadd.f32 %v1570, %v1580
        %s1585 = sld [smem:[#allocation4 + $0x59]]
        %v1586 = vstv %s1585
        %v1587 = vmul.f32 %v1586, %v1521
        %v1588 = vmul.f32 %v1586, %v1522
        %1591 = vrot.lane.b32.xlu0 %v1587, 123
        %v1592 = vpop.permute.xlu0 %1591
        %1593 = vrot.lane.b32.xlu0 %v1588, 123
        %v1594 = vpop.permute.xlu0 %1593
        %v1597 = vadd.f32 %v1583, %v1592
        %v1598 = vadd.f32 %v1584, %v1594
        %s1599 = sld [smem:[#allocation4 + $0x5a]]
        %v1600 = vstv %s1599
        %v1601 = vmul.f32 %v1600, %v1521
        %v1602 = vmul.f32 %v1600, %v1522
        %1605 = vrot.lane.b32.xlu0 %v1601, 122
        %v1606 = vpop.permute.xlu0 %1605
        %1607 = vrot.lane.b32.xlu0 %v1602, 122
        %v1608 = vpop.permute.xlu0 %1607
        %v1611 = vadd.f32 %v1597, %v1606
        %v1612 = vadd.f32 %v1598, %v1608
        %v1613 = vld [vmem:[%s414 + $0x6] sm:$0xff]
        %v1614 = vld [vmem:[%s414 + $0xe] sm:$0xff]
        %s1615 = sld [smem:[#allocation4 + $0x5b]]
        %v1616 = vstv %s1615
        %v1617 = vmul.f32 %v1616, %v1613
        %v1618 = vmul.f32 %v1616, %v1614
        %v1619 = vadd.f32 %v1611, %v1617
        %v1620 = vadd.f32 %v1612, %v1618
        %s1621 = sld [smem:[#allocation4 + $0x5c]]
        %v1622 = vstv %s1621
        %v1623 = vmul.f32 %v1622, %v1613
        %v1624 = vmul.f32 %v1622, %v1614
        %1627 = vrot.lane.b32.xlu0 %v1623, 127
        %v1628 = vpop.permute.xlu0 %1627
        %1629 = vrot.lane.b32.xlu0 %v1624, 127
        %v1630 = vpop.permute.xlu0 %1629
        %v1633 = vadd.f32 %v1619, %v1628
        %v1634 = vadd.f32 %v1620, %v1630
        %s1635 = sld [smem:[#allocation4 + $0x5d]]
        %v1636 = vstv %s1635
        %v1637 = vmul.f32 %v1636, %v1613
        %v1638 = vmul.f32 %v1636, %v1614
        %1641 = vrot.lane.b32.xlu0 %v1637, 126
        %v1642 = vpop.permute.xlu0 %1641
        %1643 = vrot.lane.b32.xlu0 %v1638, 126
        %v1644 = vpop.permute.xlu0 %1643
        %v1647 = vadd.f32 %v1633, %v1642
        %v1648 = vadd.f32 %v1634, %v1644
        %s1649 = sld [smem:[#allocation4 + $0x5e]]
        %v1650 = vstv %s1649
        %v1651 = vmul.f32 %v1650, %v1613
        %v1652 = vmul.f32 %v1650, %v1614
        %1655 = vrot.lane.b32.xlu0 %v1651, 125
        %v1656 = vpop.permute.xlu0 %1655
        %1657 = vrot.lane.b32.xlu0 %v1652, 125
        %v1658 = vpop.permute.xlu0 %1657
        %v1661 = vadd.f32 %v1647, %v1656
        %v1662 = vadd.f32 %v1648, %v1658
        %s1663 = sld [smem:[#allocation4 + $0x5f]]
        %v1664 = vstv %s1663
        %v1665 = vmul.f32 %v1664, %v1613
        %v1666 = vmul.f32 %v1664, %v1614
        %1669 = vrot.lane.b32.xlu0 %v1665, 124
        %v1670 = vpop.permute.xlu0 %1669
        %1671 = vrot.lane.b32.xlu0 %v1666, 124
        %v1672 = vpop.permute.xlu0 %1671
        %v1675 = vadd.f32 %v1661, %v1670
        %v1676 = vadd.f32 %v1662, %v1672
        %s1677 = sld [smem:[#allocation4 + $0x60]]
        %v1678 = vstv %s1677
        %v1679 = vmul.f32 %v1678, %v1613
        %v1680 = vmul.f32 %v1678, %v1614
        %1683 = vrot.lane.b32.xlu0 %v1679, 123
        %v1684 = vpop.permute.xlu0 %1683
        %1685 = vrot.lane.b32.xlu0 %v1680, 123
        %v1686 = vpop.permute.xlu0 %1685
        %v1689 = vadd.f32 %v1675, %v1684
        %v1690 = vadd.f32 %v1676, %v1686
        %s1691 = sld [smem:[#allocation4 + $0x61]]
        %v1692 = vstv %s1691
        %v1693 = vmul.f32 %v1692, %v1613
        %v1694 = vmul.f32 %v1692, %v1614
        %1697 = vrot.lane.b32.xlu0 %v1693, 122
        %v1698 = vpop.permute.xlu0 %1697
        %1699 = vrot.lane.b32.xlu0 %v1694, 122
        %v1700 = vpop.permute.xlu0 %1699
        %v1703 = vadd.f32 %v1689, %v1698
        %v1704 = vadd.f32 %v1690, %v1700
        %v1705 = vxor.u32 %v1703, 2147483648
        %v1706 = vxor.u32 %v1704, 2147483648
        %v1707 = vmul.f32 %v1705, 1.442695
        %v1708 = vpow.pop %v1707
        %v1709 = vmul.f32 %v1706, 1.442695
        %v1710 = vpow.pop %v1709
        %v1711 = vadd.f32 %v1708, 1.0
        %v1712 = vadd.f32 %v1710, 1.0
        %v1713 = vrcp.pop %v1711
        %v1714 = vmul.f32 %v1711, %v1713
        %v1715 = vsub.f32 1.0, %v1714
        %v1716 = vmul.f32 %v1713, %v1715
        %v1717 = vadd.f32 %v1713, %v1716
        %vm1718 = vweird.f32 %v1711
        %vm1719 = vweird.f32 %v1713
        %vm1720 = vmor %vm1718, %vm1719
        %v1721 = vsel %vm1720, %v1713, %v1717
        %v1722 = vand.u32 2147483647, %v1711
        %vm1723 = vcmp.eq.f32.partialorder %v1722, 8.507059e+37
        %v1724 = vand.u32 %v1711, 2147483648
        %v1725 = vor.u32 1.1754944e-38, %v1724
        %v1726 = vsel %vm1723, %v1725, %v1721
        %v1727 = vmul.f32 1.0, %v1726
        %v1728 = vrcp.pop %v1712
        %v1729 = vmul.f32 %v1712, %v1728
        %v1730 = vsub.f32 1.0, %v1729
        %v1731 = vmul.f32 %v1728, %v1730
        %v1732 = vadd.f32 %v1728, %v1731
        %vm1733 = vweird.f32 %v1712
        %vm1734 = vweird.f32 %v1728
        %vm1735 = vmor %vm1733, %vm1734
        %v1736 = vsel %vm1735, %v1728, %v1732
        %v1737 = vand.u32 2147483647, %v1712
        %vm1738 = vcmp.eq.f32.partialorder %v1737, 8.507059e+37
        %v1739 = vand.u32 %v1712, 2147483648
        %v1740 = vor.u32 1.1754944e-38, %v1739
        %v1741 = vsel %vm1738, %v1740, %v1736
        %v1742 = vmul.f32 1.0, %v1741
        %v1743 = vmul.f32 %v342, %v1727
        %v1744 = vmul.f32 %v343, %v1742
        %v1745 = vmul.f32 %v344, %v1727
        %v1746 = vmul.f32 %v345, %v1742
        %v1747 = vmul.f32 %v346, %v1727
        %v1748 = vmul.f32 %v347, %v1742
        %v1749 = vmul.f32 %v348, %v1727
        %v1750 = vmul.f32 %v349, %v1742
        %1751 = vst.msk [vmem:[%s199] sm:$0xff] %vm208, %v1743
        %1752 = vst.msk [vmem:[%s199 + $0x8] sm:$0xff] %vm208, %v1744
        %1753 = vst.msk [vmem:[%s199 + $0x10] sm:$0xff] %vm208, %v1745
        %1754 = vst.msk [vmem:[%s199 + $0x18] sm:$0xff] %vm208, %v1746
        %1755 = vst.msk [vmem:[%s199 + $0x20] sm:$0xff] %vm208, %v1747
        %1756 = vst.msk [vmem:[%s199 + $0x28] sm:$0xff] %vm208, %v1748
        %1757 = vst.msk [vmem:[%s199 + $0x30] sm:$0xff] %vm208, %v1749
        %1758 = vst.msk [vmem:[%s199 + $0x38] sm:$0xff] %vm208, %v1750
        %s1759 = sand.u32 %s105, 1
        %s1760 = scalar_lea.sflag [#allocation7], %s1759
        %s1761 = sand.u32 %s105, 1
        %s1762 = smul.addr %s1761, 64
        %s1763 = scalar_lea.vmem [#allocation8], %s1762
        // Predicated region
        $region37: #{tpu_custom_call.1} parent=31 // pred_check
          %p1764 = pneg %p115
        $region38: #{tpu_custom_call.1} parent=31 // pred_check_branch
          %1766 = sbr.rel (%p1764) target = $region40
        $region39: #{tpu_custom_call.1} parent=31 // pred_region
          %1768 = vsyncadd %s1760, 0
          %s1769 = smul.addr %s29, 8
          %s1770 = smul.addr %s1769, 8
          %s1771 = scalar_lea.hbm %s4, %s1770
          %s1772 = sshll.u32 %s1763, 4
          %s1773 = int_to_ptr.vmem [resolvable:$true] %s1772
          %s1774 = sshll.u32 %s1771, 4
          %s1775 = int_to_ptr.hbm [resolvable:$true] %s1774
          %1780 = dma.vmem_to_hbm [thread:$0]  %s1773, 1024, %s1775, %s1760, 128, 128, 8
        $region40: #{tpu_custom_call.1} parent=31 // pred_fallthru
          _
      $region32: #{tpu_custom_call.1} parent=5 // pred_fallthru
        _
      %p1781 = scmp.le.s32.totalorder 2, %s24
      // Predicated region
      $region41: #{tpu_custom_call.1} parent=5 // pred_check
        %p1782 = pneg %p1781
      $region42: #{tpu_custom_call.1} parent=5 // pred_check_branch
        %1784 = sbr.rel (%p1782) target = $region44
      $region43: #{tpu_custom_call.1} parent=5 // pred_region
        %s1785 = ssub.s32 %s24, 2
        // Predicated region
        $region45: #{tpu_custom_call.1} parent=43 // pred_check
          %p1786 = pneg %p121
        $region46: #{tpu_custom_call.1} parent=43 // pred_check_branch
          %1788 = sbr.rel (%p1786) target = $region48
        $region47: #{tpu_custom_call.1} parent=43 // pred_region
          %s1789 = sand.u32 %s106, 1
          %s1790 = scalar_lea.sflag [#allocation7], %s1789
          %s1791 = sand.u32 %s106, 1
          %s1792 = smul.addr %s1791, 64
          %s1793 = scalar_lea.vmem [#allocation8], %s1792
          %1795 = dma.done %s1790, 1024
        $region48: #{tpu_custom_call.1} parent=43 // pred_fallthru
          _
      $region44: #{tpu_custom_call.1} parent=5 // pred_fallthru
        _
    $region6: #{tpu_custom_call.1} parent=1 // loop_footer
      %s28 = sadd.s32 1, %s24
    $region7: #{tpu_custom_call.1} parent=1 // loop_footer_branch
      %23 = sbr.rel target = $region3
    $region8: #{tpu_custom_call.1} parent=1 // loop_exit
      _
    %1796 = vsyncpa [#allocation6], 1
    %s1797 = scalar_lea.sflag [#allocation6], 1
    %1798 = vsyncpa %s1797, 1
    %1799 = vsyncpa [#allocation7], 1
    %s1800 = scalar_lea.sflag [#allocation7], 1
    %1801 = vsyncpa %s1800, 1

</llo_original>
